<compile_context>
chip_gen: v6e
topology: v6e:2x2x1
jax: 0.10.0
libtpu: 0.0.40
codegen_flags: <defaults>
</compile_context>

<pallas_src>
import functools

import jax
import jax.numpy as jnp
from jax import lax
from jax.experimental import pallas as pl
from jax.experimental.pallas import tpu as pltpu


# ----------------------------- semifield defs ------------------------------
# (multiply, combine, zero); `combine` is the binary associative form of
# add_reduce (streaming reduction inside the kernel).
TROPICAL_MAX = dict(           # T_+ : dilation
    multiply=lambda img, krn: img + krn,
    combine=jnp.maximum,
    zero=-jnp.inf,
    exact_in_low_precision=True,
)
TROPICAL_MIN_NEG = dict(       # T_- with negated kernel : erosion
    multiply=lambda img, krn: img - krn,
    combine=jnp.minimum,
    zero=jnp.inf,
    exact_in_low_precision=True,
)
LINEAR = dict(                 # ordinary linear convolution (see TODO: MXU)
    multiply=lambda img, krn: img * krn,
    combine=lambda a, b: a + b,
    zero=0.0,
    exact_in_low_precision=False,
)


def _pair(v):
    if isinstance(v, (tuple, list)):
        assert len(v) == 2
        return int(v[0]), int(v[1])
    return int(v), int(v)


def _pad_spec(padding):
    if isinstance(padding, str):
        raise NotImplementedError("TODO(synk): 'same'/'valid' string padding")
    if isinstance(padding, (tuple, list)):
        a, b = padding
        if isinstance(a, (tuple, list)):
            (pyb, pye), (pxb, pxe) = a, b
        else:
            pyb = pye = int(a)
            pxb = pxe = int(b)
    else:
        pyb = pye = pxb = pxe = int(padding)
    return int(pyb), int(pye), int(pxb), int(pxe)


# ------------------------------ Pallas kernel ------------------------------
def _semifield_conv_kernel(wflat_ref, x_ref, o_ref, acc_ref, *,
                           C, Ct, Wp, kH, kW, dil_y, dil_x, R, oc,
                           zero, multiply, combine, compute_dtype,
                           num_c_blocks, unroll_c):
    # wflat_ref : SMEM (O_pad*C*kH*kW,) f32 — already spatially flipped for 'conv'
    # x_ref     : VMEM (1, Ct, Rb, 128)     — padded+flattened image rows (lane dense)
    # o_ref     : VMEM (1, oc, R, 128)      — flat output slab (lane dense)
    # acc_ref   : VMEM scratch (oc, R, 128) — cross-C-block accumulator
    ob = pl.program_id(1)          # output-channel block
    cb = pl.program_id(2)          # channel (reduction) block
    KK = kH * kW

    if num_c_blocks == 1:
        accs = tuple(jnp.full((R, 128), zero, compute_dtype) for _ in range(oc))
    else:
        @pl.when(cb == 0)
        def _():
            acc_ref[...] = jnp.full(acc_ref.shape, zero, acc_ref.dtype)
        accs = tuple(acc_ref[o] for o in range(oc))

    def c_body(ci, accs):
        accs = list(accs)
        xc = x_ref[0, ci]                       # (Rb, 128): one load per channel,
        c_glob = cb * Ct + ci                   # reused by every tap and output chan
        for ky in range(kH):
            for kx in range(kW):
                d = ky * dil_y * Wp + kx * dil_x      # flat tap offset (static)
                q, m = divmod(d, 128)
                if m == 0:
                    win = xc[q:q + R, :]
                else:
                    # window = flat image shifted by d, kept as a dense (R,128) tile
                    win = jnp.concatenate(
                        [xc[q:q + R, m:], xc[q + 1:q + R + 1, :m]], axis=1)
                base = ky * kW + kx
                for oo in range(oc):
                    wv = wflat_ref[((ob * oc + oo) * C + c_glob) * KK + base]
                    wv = wv.astype(compute_dtype)
                    accs[oo] = combine(accs[oo], multiply(win, wv))
        return tuple(accs)

    accs = lax.fori_loop(0, Ct, c_body, accs, unroll=unroll_c)

    if num_c_blocks == 1:
        for oo in range(oc):
            o_ref[0, oo] = accs[oo].astype(o_ref.dtype)
    else:
        @pl.when(cb < num_c_blocks - 1)
        def _():
            for oo in range(oc):
                acc_ref[oo] = accs[oo]

        @pl.when(cb == num_c_blocks - 1)
        def _():
            for oo in range(oc):
                o_ref[0, oo] = accs[oo].astype(o_ref.dtype)


# ------------------------------ host wrapper -------------------------------
def broadcast_conv(imgs, kernel, *, stride=1, padding=0, dilation=1,
                   groups=1, kind="conv", semifield=TROPICAL_MAX):
    """Semifield convolution. imgs: (B,C,H,W) float, kernel: (O,C,kH,kW)."""
    B, C, H, W = imgs.shape
    O, Ck, kH, kW = kernel.shape
    assert groups == 1 and Ck == C, "TODO(synk): groups / group_broadcasting"
    assert kind in ("conv", "corr")
    assert jnp.issubdtype(imgs.dtype, jnp.floating), "float inputs only"

    str_y, str_x = _pair(stride)
    dil_y, dil_x = _pair(dilation)
    pyb, pye, pxb, pxe = _pad_spec(padding)

    zero = float(semifield["zero"])
    multiply = semifield["multiply"]
    combine = semifield["combine"]

    # bf16 streaming path (v6e/v7x): max/min are exact in bf16; f32 otherwise.
    if imgs.dtype == jnp.bfloat16 and semifield.get("exact_in_low_precision", False):
        compute_dtype = jnp.bfloat16
    else:
        compute_dtype = jnp.float32

    Hp, Wp = H + pyb + pye, W + pxb + pxe
    eky, ekx = dil_y * (kH - 1) + 1, dil_x * (kW - 1) + 1
    outHd, outWd = Hp - eky + 1, Wp - ekx + 1            # dense (stride-1) output
    assert outHd > 0 and outWd > 0, "kernel larger than padded input"

    # ---- lane-dense flat layout sizing ----
    d_max = (kH - 1) * dil_y * Wp + (kW - 1) * dil_x     # largest flat tap offset
    R = pl.cdiv(outHd * Wp, 128)                         # accumulator rows x 128 lanes
    Rb = R + d_max // 128 + 1                            # input rows incl. shift halo

    # ---- O blocking: bound live accumulators + give megacore >= 2 steps/TC ----
    oc = min(O, 8)
    while B * pl.cdiv(O, oc) < 4 and oc > 2:
        oc = pl.cdiv(oc, 2)
    O_blocks = pl.cdiv(O, oc)
    O_pad = O_blocks * oc

    esz_c = jnp.dtype(compute_dtype).itemsize
    esz_o = jnp.dtype(imgs.dtype).itemsize

    # ---- per-generation VMEM budget (clamped to <= 3/4 of physical VMEM) ----
    vmem_cap = 64 << 20                     # assume smallest (v7x) if query fails
    try:
        vmem_cap = int(pltpu.get_tpu_info().vmem_capacity_bytes)
    except Exception:
        pass
    vmem_budget = min((vmem_cap * 3) // 4, 96 << 20)

    def _vmem_est(ct):
        return (2 * ct * Rb * 128 * esz_c        # double-buffered input block
                + 2 * oc * R * 128 * esz_o       # double-buffered output block
                + oc * R * 128 * esz_c)          # accumulator scratch

    Ct = C
    for cand in sorted((x for x in range(1, C + 1) if C % x == 0), reverse=True):
        Ct = cand
        if _vmem_est(cand) <= vmem_budget:
            break
    num_c_blocks = C // Ct
    unroll_c = max(1, min(Ct, 4))

    # ---- host-side pad (with the semifield zero) + spatial flatten ----------
    x = imgs.astype(compute_dtype)
    xp = jnp.pad(x, ((0, 0), (0, 0), (pyb, pye), (pxb, pxe)),
                 constant_values=zero)
    flat = xp.reshape(B, C, Hp * Wp)
    flat = jnp.pad(flat, ((0, 0), (0, 0), (0, Rb * 128 - Hp * Wp)),
                   constant_values=zero)
    xflat = flat.reshape(B, C, Rb, 128)

    # glue: 'conv' flips the kernel spatially (kernel.flip((2, 3)))
    w = kernel.astype(jnp.float32)
    if kind == "conv":
        w = w[:, :, ::-1, ::-1]
    if O_pad > O:
        w = jnp.concatenate(
            [w, jnp.zeros((O_pad - O, C, kH, kW), jnp.float32)], axis=0)
    wflat = w.reshape(-1)                  # flat 1-D f32 table for SMEM

    kern = functools.partial(
        _semifield_conv_kernel,
        C=C, Ct=Ct, Wp=Wp, kH=kH, kW=kW, dil_y=dil_y, dil_x=dil_x,
        R=R, oc=oc, zero=zero, multiply=multiply, combine=combine,
        compute_dtype=compute_dtype, num_c_blocks=num_c_blocks,
        unroll_c=unroll_c)

    # Cost hint: (max,+) has no MXU lowering -> VPU + HBM bound.
    flops = 2 * B * O * C * kH * kW * outHd * outWd
    bytes_accessed = int(xflat.size * esz_c + B * O_pad * R * 128 * esz_o
                         + wflat.size * 4)
    cost = pl.CostEstimate(flops=flops, transcendentals=0,
                           bytes_accessed=bytes_accessed)

    est = _vmem_est(Ct)
    cp_kwargs = dict(dimension_semantics=("parallel", "parallel", "arbitrary"))
    if est > (12 << 20):   # above the most conservative default scoped limit
        cp_kwargs["vmem_limit_bytes"] = int(
            min(max(est * 5 // 4, est + (1 << 20)), vmem_budget))

    out_flat = pl.pallas_call(
        kern,
        out_shape=jax.ShapeDtypeStruct((B, O_pad, R, 128), imgs.dtype),
        grid=(B, O_blocks, num_c_blocks),
        in_specs=[
            pl.BlockSpec(memory_space=pltpu.MemorySpace.SMEM),            # weights
            pl.BlockSpec((1, Ct, Rb, 128), lambda b, ob, cb: (b, cb, 0, 0)),
        ],
        out_specs=pl.BlockSpec((1, oc, R, 128), lambda b, ob, cb: (b, ob, 0, 0)),
        scratch_shapes=[pltpu.VMEM((oc, R, 128), compute_dtype)],
        compiler_params=pltpu.CompilerParams(**cp_kwargs),
        cost_estimate=cost,
    )(wflat, xflat)

    # Host-side un-flattening (layout plumbing only, not compute-hoisting):
    # flat acc position y*Wp + x  ->  (y, x), drop the kW-1 garbage columns.
    dense = out_flat.reshape(B, O_pad, R * 128)[:, :O, :outHd * Wp]
    dense = dense.reshape(B, O, outHd, Wp)[:, :, :, :outWd]
    return dense[:, :, ::str_y, ::str_x]


# ------------------------------ JAX reference ------------------------------
def broadcast_conv_ref(imgs, kernel, *, stride=1, padding=0, dilation=1,
                       kind="conv", semifield=TROPICAL_MAX):
    B, C, H, W = imgs.shape
    O, _, kH, kW = kernel.shape
    str_y, str_x = _pair(stride)
    dil_y, dil_x = _pair(dilation)
    pyb, pye, pxb, pxe = _pad_spec(padding)
    zero = semifield["zero"]
    xp = jnp.pad(imgs.astype(jnp.float32),
                 ((0, 0), (0, 0), (pyb, pye), (pxb, pxe)),
                 constant_values=zero)
    w = kernel.astype(jnp.float32)
    if kind == "conv":
        w = w[:, :, ::-1, ::-1]
    Hp, Wp = H + pyb + pye, W + pxb + pxe
    outHd = Hp - dil_y * (kH - 1)
    outWd = Wp - dil_x * (kW - 1)
    out = jnp.full((B, O, outHd, outWd), zero, dtype=jnp.float32)
    for c in range(C):
        for ky in range(kH):
            for kx in range(kW):
                win = xp[:, c, ky * dil_y:ky * dil_y + outHd,
                         kx * dil_x:kx * dil_x + outWd]            # (B,outHd,outWd)
                val = semifield["multiply"](
                    win[:, None], w[None, :, c, ky, kx, None, None])
                out = semifield["combine"](out, val)
    return out[:, :, ::str_y, ::str_x].astype(imgs.dtype)


# ---------------------------------- main -----------------------------------
if __name__ == "__main__":
    key = jax.random.PRNGKey(0)
    k1, k2 = jax.random.split(key)

    B, C, H, W = 2, 4, 16, 16       # input  (NCHW)
    O, kH, kW = 4, 3, 3             # kernel (O, C, kH, kW)
    padding = 1                     # 'same' for 3x3, stride 1

    imgs = jax.random.normal(k1, (B, C, H, W), dtype=jnp.float32)
    weights = 0.1 * jax.random.normal(k2, (O, C, kH, kW), dtype=jnp.float32)

    out = broadcast_conv(imgs, weights, padding=padding, kind="conv")
    out = jax.block_until_ready(out)

    ref = broadcast_conv_ref(imgs, weights, padding=padding, kind="conv")
    assert out.shape == (B, O, H, W), out.shape
    assert jnp.allclose(out, ref, atol=1e-5, rtol=1e-5), "mismatch vs reference"

    print("KERNEL_OK")
</pallas_src>

<mosaic_0001>
module attributes {stable_mosaic.version = 11 : i64} {
  func.func @_semifield_conv_kernel(%arg0: i32, %arg1: i32, %arg2: i32, %arg3: memref<144xf32, #tpu.memory_space<smem>>, %arg4: memref<1x4x4x128xf32, #tpu.memory_space<vmem>>, %arg5: memref<1x2x3x128xf32, #tpu.memory_space<vmem>>, %arg6: memref<2x3x128xf32, #tpu.memory_space<vmem>>) attributes {dimension_semantics = [#tpu.dimension_semantics<parallel>, #tpu.dimension_semantics<parallel>, #tpu.dimension_semantics<arbitrary>], iteration_bounds = array<i64: 2, 2, 1>, scalar_prefetch = 0 : i64, scratch_operands = 1 : i64, tpu.core_type = #tpu.core_type<tc>, window_params = [{transform_indices = @transform_0, window_bounds = array<i64: 144>}, {transform_indices = @transform_1, window_bounds = array<i64: 1, 4, 4, 128>}, {transform_indices = @transform_2, window_bounds = array<i64: 1, 2, 3, 128>}]} {
    %cst = arith.constant 0xFF800000 : f32
    %0 = vector.broadcast %cst : f32 to vector<3x128xf32>
    %cst_0 = arith.constant 0xFF800000 : f32
    %1 = vector.broadcast %cst_0 : f32 to vector<3x128xf32>
    %c0_i32 = arith.constant 0 : i32
    %c0 = arith.constant 0 : index
    %2 = arith.index_cast %c0_i32 : i32 to index
    %c0_1 = arith.constant 0 : index
    %c0_2 = arith.constant 0 : index
    %3 = vector.load %arg4[%c0, %2, %c0_1, %c0_2] : memref<1x4x4x128xf32, #tpu.memory_space<vmem>>, vector<1x1x4x128xf32>
    %4 = vector.shape_cast %3 : vector<1x1x4x128xf32> to vector<4x128xf32>
    %c4_i32 = arith.constant 4 : i32
    %5 = arith.muli %arg2, %c4_i32 : i32
    %6 = arith.addi %5, %c0_i32 : i32
    %7 = vector.extract_strided_slice %4 {offsets = [0, 0], sizes = [3, 128], strides = [1, 1]} : vector<4x128xf32> to vector<3x128xf32>
    %c2_i32 = arith.constant 2 : i32
    %8 = arith.muli %arg1, %c2_i32 : i32
    %c0_i32_3 = arith.constant 0 : i32
    %9 = arith.addi %8, %c0_i32_3 : i32
    %c4_i32_4 = arith.constant 4 : i32
    %10 = arith.muli %9, %c4_i32_4 : i32
    %11 = arith.addi %10, %6 : i32
    %c9_i32 = arith.constant 9 : i32
    %12 = arith.muli %11, %c9_i32 : i32
    %c0_i32_5 = arith.constant 0 : i32
    %13 = arith.addi %12, %c0_i32_5 : i32
    %14 = arith.index_cast %13 : i32 to index
    %15 = memref.load %arg3[%14] : memref<144xf32, #tpu.memory_space<smem>>
    %16 = vector.broadcast %15 : f32 to vector<3x128xf32>
    %17 = arith.addf %7, %16 : vector<3x128xf32>
    %18 = arith.maximumf %0, %17 : vector<3x128xf32>
    %c2_i32_6 = arith.constant 2 : i32
    %19 = arith.muli %arg1, %c2_i32_6 : i32
    %c1_i32 = arith.constant 1 : i32
    %20 = arith.addi %19, %c1_i32 : i32
    %c4_i32_7 = arith.constant 4 : i32
    %21 = arith.muli %20, %c4_i32_7 : i32
    %22 = arith.addi %21, %6 : i32
    %c9_i32_8 = arith.constant 9 : i32
    %23 = arith.muli %22, %c9_i32_8 : i32
    %c0_i32_9 = arith.constant 0 : i32
    %24 = arith.addi %23, %c0_i32_9 : i32
    %25 = arith.index_cast %24 : i32 to index
    %26 = memref.load %arg3[%25] : memref<144xf32, #tpu.memory_space<smem>>
    %27 = vector.broadcast %26 : f32 to vector<3x128xf32>
    %28 = arith.addf %7, %27 : vector<3x128xf32>
    %29 = arith.maximumf %1, %28 : vector<3x128xf32>
    %30 = vector.extract_strided_slice %4 {offsets = [0, 1], sizes = [3, 127], strides = [1, 1]} : vector<4x128xf32> to vector<3x127xf32>
    %31 = vector.extract_strided_slice %4 {offsets = [1, 0], sizes = [3, 1], strides = [1, 1]} : vector<4x128xf32> to vector<3x1xf32>
    %32 = tpu.concatenate %30, %31 in 1 : vector<3x127xf32>, vector<3x1xf32> -> vector<3x128xf32>
    %c2_i32_10 = arith.constant 2 : i32
    %33 = arith.muli %arg1, %c2_i32_10 : i32
    %c0_i32_11 = arith.constant 0 : i32
    %34 = arith.addi %33, %c0_i32_11 : i32
    %c4_i32_12 = arith.constant 4 : i32
    %35 = arith.muli %34, %c4_i32_12 : i32
    %36 = arith.addi %35, %6 : i32
    %c9_i32_13 = arith.constant 9 : i32
    %37 = arith.muli %36, %c9_i32_13 : i32
    %c1_i32_14 = arith.constant 1 : i32
    %38 = arith.addi %37, %c1_i32_14 : i32
    %39 = arith.index_cast %38 : i32 to index
    %40 = memref.load %arg3[%39] : memref<144xf32, #tpu.memory_space<smem>>
    %41 = vector.broadcast %40 : f32 to vector<3x128xf32>
    %42 = arith.addf %32, %41 : vector<3x128xf32>
    %43 = arith.maximumf %18, %42 : vector<3x128xf32>
    %c2_i32_15 = arith.constant 2 : i32
    %44 = arith.muli %arg1, %c2_i32_15 : i32
    %c1_i32_16 = arith.constant 1 : i32
    %45 = arith.addi %44, %c1_i32_16 : i32
    %c4_i32_17 = arith.constant 4 : i32
    %46 = arith.muli %45, %c4_i32_17 : i32
    %47 = arith.addi %46, %6 : i32
    %c9_i32_18 = arith.constant 9 : i32
    %48 = arith.muli %47, %c9_i32_18 : i32
    %c1_i32_19 = arith.constant 1 : i32
    %49 = arith.addi %48, %c1_i32_19 : i32
    %50 = arith.index_cast %49 : i32 to index
    %51 = memref.load %arg3[%50] : memref<144xf32, #tpu.memory_space<smem>>
    %52 = vector.broadcast %51 : f32 to vector<3x128xf32>
    %53 = arith.addf %32, %52 : vector<3x128xf32>
    %54 = arith.maximumf %29, %53 : vector<3x128xf32>
    %55 = vector.extract_strided_slice %4 {offsets = [0, 2], sizes = [3, 126], strides = [1, 1]} : vector<4x128xf32> to vector<3x126xf32>
    %56 = vector.extract_strided_slice %4 {offsets = [1, 0], sizes = [3, 2], strides = [1, 1]} : vector<4x128xf32> to vector<3x2xf32>
    %57 = tpu.concatenate %55, %56 in 1 : vector<3x126xf32>, vector<3x2xf32> -> vector<3x128xf32>
    %c2_i32_20 = arith.constant 2 : i32
    %58 = arith.muli %arg1, %c2_i32_20 : i32
    %c0_i32_21 = arith.constant 0 : i32
    %59 = arith.addi %58, %c0_i32_21 : i32
    %c4_i32_22 = arith.constant 4 : i32
    %60 = arith.muli %59, %c4_i32_22 : i32
    %61 = arith.addi %60, %6 : i32
    %c9_i32_23 = arith.constant 9 : i32
    %62 = arith.muli %61, %c9_i32_23 : i32
    %c2_i32_24 = arith.constant 2 : i32
    %63 = arith.addi %62, %c2_i32_24 : i32
    %64 = arith.index_cast %63 : i32 to index
    %65 = memref.load %arg3[%64] : memref<144xf32, #tpu.memory_space<smem>>
    %66 = vector.broadcast %65 : f32 to vector<3x128xf32>
    %67 = arith.addf %57, %66 : vector<3x128xf32>
    %68 = arith.maximumf %43, %67 : vector<3x128xf32>
    %c2_i32_25 = arith.constant 2 : i32
    %69 = arith.muli %arg1, %c2_i32_25 : i32
    %c1_i32_26 = arith.constant 1 : i32
    %70 = arith.addi %69, %c1_i32_26 : i32
    %c4_i32_27 = arith.constant 4 : i32
    %71 = arith.muli %70, %c4_i32_27 : i32
    %72 = arith.addi %71, %6 : i32
    %c9_i32_28 = arith.constant 9 : i32
    %73 = arith.muli %72, %c9_i32_28 : i32
    %c2_i32_29 = arith.constant 2 : i32
    %74 = arith.addi %73, %c2_i32_29 : i32
    %75 = arith.index_cast %74 : i32 to index
    %76 = memref.load %arg3[%75] : memref<144xf32, #tpu.memory_space<smem>>
    %77 = vector.broadcast %76 : f32 to vector<3x128xf32>
    %78 = arith.addf %57, %77 : vector<3x128xf32>
    %79 = arith.maximumf %54, %78 : vector<3x128xf32>
    %80 = vector.extract_strided_slice %4 {offsets = [0, 18], sizes = [3, 110], strides = [1, 1]} : vector<4x128xf32> to vector<3x110xf32>
    %81 = vector.extract_strided_slice %4 {offsets = [1, 0], sizes = [3, 18], strides = [1, 1]} : vector<4x128xf32> to vector<3x18xf32>
    %82 = tpu.concatenate %80, %81 in 1 : vector<3x110xf32>, vector<3x18xf32> -> vector<3x128xf32>
    %c2_i32_30 = arith.constant 2 : i32
    %83 = arith.muli %arg1, %c2_i32_30 : i32
    %c0_i32_31 = arith.constant 0 : i32
    %84 = arith.addi %83, %c0_i32_31 : i32
    %c4_i32_32 = arith.constant 4 : i32
    %85 = arith.muli %84, %c4_i32_32 : i32
    %86 = arith.addi %85, %6 : i32
    %c9_i32_33 = arith.constant 9 : i32
    %87 = arith.muli %86, %c9_i32_33 : i32
    %c3_i32 = arith.constant 3 : i32
    %88 = arith.addi %87, %c3_i32 : i32
    %89 = arith.index_cast %88 : i32 to index
    %90 = memref.load %arg3[%89] : memref<144xf32, #tpu.memory_space<smem>>
    %91 = vector.broadcast %90 : f32 to vector<3x128xf32>
    %92 = arith.addf %82, %91 : vector<3x128xf32>
    %93 = arith.maximumf %68, %92 : vector<3x128xf32>
    %c2_i32_34 = arith.constant 2 : i32
    %94 = arith.muli %arg1, %c2_i32_34 : i32
    %c1_i32_35 = arith.constant 1 : i32
    %95 = arith.addi %94, %c1_i32_35 : i32
    %c4_i32_36 = arith.constant 4 : i32
    %96 = arith.muli %95, %c4_i32_36 : i32
    %97 = arith.addi %96, %6 : i32
    %c9_i32_37 = arith.constant 9 : i32
    %98 = arith.muli %97, %c9_i32_37 : i32
    %c3_i32_38 = arith.constant 3 : i32
    %99 = arith.addi %98, %c3_i32_38 : i32
    %100 = arith.index_cast %99 : i32 to index
    %101 = memref.load %arg3[%100] : memref<144xf32, #tpu.memory_space<smem>>
    %102 = vector.broadcast %101 : f32 to vector<3x128xf32>
    %103 = arith.addf %82, %102 : vector<3x128xf32>
    %104 = arith.maximumf %79, %103 : vector<3x128xf32>
    %105 = vector.extract_strided_slice %4 {offsets = [0, 19], sizes = [3, 109], strides = [1, 1]} : vector<4x128xf32> to vector<3x109xf32>
    %106 = vector.extract_strided_slice %4 {offsets = [1, 0], sizes = [3, 19], strides = [1, 1]} : vector<4x128xf32> to vector<3x19xf32>
    %107 = tpu.concatenate %105, %106 in 1 : vector<3x109xf32>, vector<3x19xf32> -> vector<3x128xf32>
    %c2_i32_39 = arith.constant 2 : i32
    %108 = arith.muli %arg1, %c2_i32_39 : i32
    %c0_i32_40 = arith.constant 0 : i32
    %109 = arith.addi %108, %c0_i32_40 : i32
    %c4_i32_41 = arith.constant 4 : i32
    %110 = arith.muli %109, %c4_i32_41 : i32
    %111 = arith.addi %110, %6 : i32
    %c9_i32_42 = arith.constant 9 : i32
    %112 = arith.muli %111, %c9_i32_42 : i32
    %c4_i32_43 = arith.constant 4 : i32
    %113 = arith.addi %112, %c4_i32_43 : i32
    %114 = arith.index_cast %113 : i32 to index
    %115 = memref.load %arg3[%114] : memref<144xf32, #tpu.memory_space<smem>>
    %116 = vector.broadcast %115 : f32 to vector<3x128xf32>
    %117 = arith.addf %107, %116 : vector<3x128xf32>
    %118 = arith.maximumf %93, %117 : vector<3x128xf32>
    %c2_i32_44 = arith.constant 2 : i32
    %119 = arith.muli %arg1, %c2_i32_44 : i32
    %c1_i32_45 = arith.constant 1 : i32
    %120 = arith.addi %119, %c1_i32_45 : i32
    %c4_i32_46 = arith.constant 4 : i32
    %121 = arith.muli %120, %c4_i32_46 : i32
    %122 = arith.addi %121, %6 : i32
    %c9_i32_47 = arith.constant 9 : i32
    %123 = arith.muli %122, %c9_i32_47 : i32
    %c4_i32_48 = arith.constant 4 : i32
    %124 = arith.addi %123, %c4_i32_48 : i32
    %125 = arith.index_cast %124 : i32 to index
    %126 = memref.load %arg3[%125] : memref<144xf32, #tpu.memory_space<smem>>
    %127 = vector.broadcast %126 : f32 to vector<3x128xf32>
    %128 = arith.addf %107, %127 : vector<3x128xf32>
    %129 = arith.maximumf %104, %128 : vector<3x128xf32>
    %130 = vector.extract_strided_slice %4 {offsets = [0, 20], sizes = [3, 108], strides = [1, 1]} : vector<4x128xf32> to vector<3x108xf32>
    %131 = vector.extract_strided_slice %4 {offsets = [1, 0], sizes = [3, 20], strides = [1, 1]} : vector<4x128xf32> to vector<3x20xf32>
    %132 = tpu.concatenate %130, %131 in 1 : vector<3x108xf32>, vector<3x20xf32> -> vector<3x128xf32>
    %c2_i32_49 = arith.constant 2 : i32
    %133 = arith.muli %arg1, %c2_i32_49 : i32
    %c0_i32_50 = arith.constant 0 : i32
    %134 = arith.addi %133, %c0_i32_50 : i32
    %c4_i32_51 = arith.constant 4 : i32
    %135 = arith.muli %134, %c4_i32_51 : i32
    %136 = arith.addi %135, %6 : i32
    %c9_i32_52 = arith.constant 9 : i32
    %137 = arith.muli %136, %c9_i32_52 : i32
    %c5_i32 = arith.constant 5 : i32
    %138 = arith.addi %137, %c5_i32 : i32
    %139 = arith.index_cast %138 : i32 to index
    %140 = memref.load %arg3[%139] : memref<144xf32, #tpu.memory_space<smem>>
    %141 = vector.broadcast %140 : f32 to vector<3x128xf32>
    %142 = arith.addf %132, %141 : vector<3x128xf32>
    %143 = arith.maximumf %118, %142 : vector<3x128xf32>
    %c2_i32_53 = arith.constant 2 : i32
    %144 = arith.muli %arg1, %c2_i32_53 : i32
    %c1_i32_54 = arith.constant 1 : i32
    %145 = arith.addi %144, %c1_i32_54 : i32
    %c4_i32_55 = arith.constant 4 : i32
    %146 = arith.muli %145, %c4_i32_55 : i32
    %147 = arith.addi %146, %6 : i32
    %c9_i32_56 = arith.constant 9 : i32
    %148 = arith.muli %147, %c9_i32_56 : i32
    %c5_i32_57 = arith.constant 5 : i32
    %149 = arith.addi %148, %c5_i32_57 : i32
    %150 = arith.index_cast %149 : i32 to index
    %151 = memref.load %arg3[%150] : memref<144xf32, #tpu.memory_space<smem>>
    %152 = vector.broadcast %151 : f32 to vector<3x128xf32>
    %153 = arith.addf %132, %152 : vector<3x128xf32>
    %154 = arith.maximumf %129, %153 : vector<3x128xf32>
    %155 = vector.extract_strided_slice %4 {offsets = [0, 36], sizes = [3, 92], strides = [1, 1]} : vector<4x128xf32> to vector<3x92xf32>
    %156 = vector.extract_strided_slice %4 {offsets = [1, 0], sizes = [3, 36], strides = [1, 1]} : vector<4x128xf32> to vector<3x36xf32>
    %157 = tpu.concatenate %155, %156 in 1 : vector<3x92xf32>, vector<3x36xf32> -> vector<3x128xf32>
    %c2_i32_58 = arith.constant 2 : i32
    %158 = arith.muli %arg1, %c2_i32_58 : i32
    %c0_i32_59 = arith.constant 0 : i32
    %159 = arith.addi %158, %c0_i32_59 : i32
    %c4_i32_60 = arith.constant 4 : i32
    %160 = arith.muli %159, %c4_i32_60 : i32
    %161 = arith.addi %160, %6 : i32
    %c9_i32_61 = arith.constant 9 : i32
    %162 = arith.muli %161, %c9_i32_61 : i32
    %c6_i32 = arith.constant 6 : i32
    %163 = arith.addi %162, %c6_i32 : i32
    %164 = arith.index_cast %163 : i32 to index
    %165 = memref.load %arg3[%164] : memref<144xf32, #tpu.memory_space<smem>>
    %166 = vector.broadcast %165 : f32 to vector<3x128xf32>
    %167 = arith.addf %157, %166 : vector<3x128xf32>
    %168 = arith.maximumf %143, %167 : vector<3x128xf32>
    %c2_i32_62 = arith.constant 2 : i32
    %169 = arith.muli %arg1, %c2_i32_62 : i32
    %c1_i32_63 = arith.constant 1 : i32
    %170 = arith.addi %169, %c1_i32_63 : i32
    %c4_i32_64 = arith.constant 4 : i32
    %171 = arith.muli %170, %c4_i32_64 : i32
    %172 = arith.addi %171, %6 : i32
    %c9_i32_65 = arith.constant 9 : i32
    %173 = arith.muli %172, %c9_i32_65 : i32
    %c6_i32_66 = arith.constant 6 : i32
    %174 = arith.addi %173, %c6_i32_66 : i32
    %175 = arith.index_cast %174 : i32 to index
    %176 = memref.load %arg3[%175] : memref<144xf32, #tpu.memory_space<smem>>
    %177 = vector.broadcast %176 : f32 to vector<3x128xf32>
    %178 = arith.addf %157, %177 : vector<3x128xf32>
    %179 = arith.maximumf %154, %178 : vector<3x128xf32>
    %180 = vector.extract_strided_slice %4 {offsets = [0, 37], sizes = [3, 91], strides = [1, 1]} : vector<4x128xf32> to vector<3x91xf32>
    %181 = vector.extract_strided_slice %4 {offsets = [1, 0], sizes = [3, 37], strides = [1, 1]} : vector<4x128xf32> to vector<3x37xf32>
    %182 = tpu.concatenate %180, %181 in 1 : vector<3x91xf32>, vector<3x37xf32> -> vector<3x128xf32>
    %c2_i32_67 = arith.constant 2 : i32
    %183 = arith.muli %arg1, %c2_i32_67 : i32
    %c0_i32_68 = arith.constant 0 : i32
    %184 = arith.addi %183, %c0_i32_68 : i32
    %c4_i32_69 = arith.constant 4 : i32
    %185 = arith.muli %184, %c4_i32_69 : i32
    %186 = arith.addi %185, %6 : i32
    %c9_i32_70 = arith.constant 9 : i32
    %187 = arith.muli %186, %c9_i32_70 : i32
    %c7_i32 = arith.constant 7 : i32
    %188 = arith.addi %187, %c7_i32 : i32
    %189 = arith.index_cast %188 : i32 to index
    %190 = memref.load %arg3[%189] : memref<144xf32, #tpu.memory_space<smem>>
    %191 = vector.broadcast %190 : f32 to vector<3x128xf32>
    %192 = arith.addf %182, %191 : vector<3x128xf32>
    %193 = arith.maximumf %168, %192 : vector<3x128xf32>
    %c2_i32_71 = arith.constant 2 : i32
    %194 = arith.muli %arg1, %c2_i32_71 : i32
    %c1_i32_72 = arith.constant 1 : i32
    %195 = arith.addi %194, %c1_i32_72 : i32
    %c4_i32_73 = arith.constant 4 : i32
    %196 = arith.muli %195, %c4_i32_73 : i32
    %197 = arith.addi %196, %6 : i32
    %c9_i32_74 = arith.constant 9 : i32
    %198 = arith.muli %197, %c9_i32_74 : i32
    %c7_i32_75 = arith.constant 7 : i32
    %199 = arith.addi %198, %c7_i32_75 : i32
    %200 = arith.index_cast %199 : i32 to index
    %201 = memref.load %arg3[%200] : memref<144xf32, #tpu.memory_space<smem>>
    %202 = vector.broadcast %201 : f32 to vector<3x128xf32>
    %203 = arith.addf %182, %202 : vector<3x128xf32>
    %204 = arith.maximumf %179, %203 : vector<3x128xf32>
    %205 = vector.extract_strided_slice %4 {offsets = [0, 38], sizes = [3, 90], strides = [1, 1]} : vector<4x128xf32> to vector<3x90xf32>
    %206 = vector.extract_strided_slice %4 {offsets = [1, 0], sizes = [3, 38], strides = [1, 1]} : vector<4x128xf32> to vector<3x38xf32>
    %207 = tpu.concatenate %205, %206 in 1 : vector<3x90xf32>, vector<3x38xf32> -> vector<3x128xf32>
    %c2_i32_76 = arith.constant 2 : i32
    %208 = arith.muli %arg1, %c2_i32_76 : i32
    %c0_i32_77 = arith.constant 0 : i32
    %209 = arith.addi %208, %c0_i32_77 : i32
    %c4_i32_78 = arith.constant 4 : i32
    %210 = arith.muli %209, %c4_i32_78 : i32
    %211 = arith.addi %210, %6 : i32
    %c9_i32_79 = arith.constant 9 : i32
    %212 = arith.muli %211, %c9_i32_79 : i32
    %c8_i32 = arith.constant 8 : i32
    %213 = arith.addi %212, %c8_i32 : i32
    %214 = arith.index_cast %213 : i32 to index
    %215 = memref.load %arg3[%214] : memref<144xf32, #tpu.memory_space<smem>>
    %216 = vector.broadcast %215 : f32 to vector<3x128xf32>
    %217 = arith.addf %207, %216 : vector<3x128xf32>
    %218 = arith.maximumf %193, %217 : vector<3x128xf32>
    %c2_i32_80 = arith.constant 2 : i32
    %219 = arith.muli %arg1, %c2_i32_80 : i32
    %c1_i32_81 = arith.constant 1 : i32
    %220 = arith.addi %219, %c1_i32_81 : i32
    %c4_i32_82 = arith.constant 4 : i32
    %221 = arith.muli %220, %c4_i32_82 : i32
    %222 = arith.addi %221, %6 : i32
    %c9_i32_83 = arith.constant 9 : i32
    %223 = arith.muli %222, %c9_i32_83 : i32
    %c8_i32_84 = arith.constant 8 : i32
    %224 = arith.addi %223, %c8_i32_84 : i32
    %225 = arith.index_cast %224 : i32 to index
    %226 = memref.load %arg3[%225] : memref<144xf32, #tpu.memory_space<smem>>
    %227 = vector.broadcast %226 : f32 to vector<3x128xf32>
    %228 = arith.addf %207, %227 : vector<3x128xf32>
    %229 = arith.maximumf %204, %228 : vector<3x128xf32>
    %c1_i32_85 = arith.constant 1 : i32
    %c0_86 = arith.constant 0 : index
    %230 = arith.index_cast %c1_i32_85 : i32 to index
    %c0_87 = arith.constant 0 : index
    %c0_88 = arith.constant 0 : index
    %231 = vector.load %arg4[%c0_86, %230, %c0_87, %c0_88] : memref<1x4x4x128xf32, #tpu.memory_space<vmem>>, vector<1x1x4x128xf32>
    %232 = vector.shape_cast %231 : vector<1x1x4x128xf32> to vector<4x128xf32>
    %c4_i32_89 = arith.constant 4 : i32
    %233 = arith.muli %arg2, %c4_i32_89 : i32
    %234 = arith.addi %233, %c1_i32_85 : i32
    %235 = vector.extract_strided_slice %232 {offsets = [0, 0], sizes = [3, 128], strides = [1, 1]} : vector<4x128xf32> to vector<3x128xf32>
    %c2_i32_90 = arith.constant 2 : i32
    %236 = arith.muli %arg1, %c2_i32_90 : i32
    %c0_i32_91 = arith.constant 0 : i32
    %237 = arith.addi %236, %c0_i32_91 : i32
    %c4_i32_92 = arith.constant 4 : i32
    %238 = arith.muli %237, %c4_i32_92 : i32
    %239 = arith.addi %238, %234 : i32
    %c9_i32_93 = arith.constant 9 : i32
    %240 = arith.muli %239, %c9_i32_93 : i32
    %c0_i32_94 = arith.constant 0 : i32
    %241 = arith.addi %240, %c0_i32_94 : i32
    %242 = arith.index_cast %241 : i32 to index
    %243 = memref.load %arg3[%242] : memref<144xf32, #tpu.memory_space<smem>>
    %244 = vector.broadcast %243 : f32 to vector<3x128xf32>
    %245 = arith.addf %235, %244 : vector<3x128xf32>
    %246 = arith.maximumf %218, %245 : vector<3x128xf32>
    %c2_i32_95 = arith.constant 2 : i32
    %247 = arith.muli %arg1, %c2_i32_95 : i32
    %c1_i32_96 = arith.constant 1 : i32
    %248 = arith.addi %247, %c1_i32_96 : i32
    %c4_i32_97 = arith.constant 4 : i32
    %249 = arith.muli %248, %c4_i32_97 : i32
    %250 = arith.addi %249, %234 : i32
    %c9_i32_98 = arith.constant 9 : i32
    %251 = arith.muli %250, %c9_i32_98 : i32
    %c0_i32_99 = arith.constant 0 : i32
    %252 = arith.addi %251, %c0_i32_99 : i32
    %253 = arith.index_cast %252 : i32 to index
    %254 = memref.load %arg3[%253] : memref<144xf32, #tpu.memory_space<smem>>
    %255 = vector.broadcast %254 : f32 to vector<3x128xf32>
    %256 = arith.addf %235, %255 : vector<3x128xf32>
    %257 = arith.maximumf %229, %256 : vector<3x128xf32>
    %258 = vector.extract_strided_slice %232 {offsets = [0, 1], sizes = [3, 127], strides = [1, 1]} : vector<4x128xf32> to vector<3x127xf32>
    %259 = vector.extract_strided_slice %232 {offsets = [1, 0], sizes = [3, 1], strides = [1, 1]} : vector<4x128xf32> to vector<3x1xf32>
    %260 = tpu.concatenate %258, %259 in 1 : vector<3x127xf32>, vector<3x1xf32> -> vector<3x128xf32>
    %c2_i32_100 = arith.constant 2 : i32
    %261 = arith.muli %arg1, %c2_i32_100 : i32
    %c0_i32_101 = arith.constant 0 : i32
    %262 = arith.addi %261, %c0_i32_101 : i32
    %c4_i32_102 = arith.constant 4 : i32
    %263 = arith.muli %262, %c4_i32_102 : i32
    %264 = arith.addi %263, %234 : i32
    %c9_i32_103 = arith.constant 9 : i32
    %265 = arith.muli %264, %c9_i32_103 : i32
    %c1_i32_104 = arith.constant 1 : i32
    %266 = arith.addi %265, %c1_i32_104 : i32
    %267 = arith.index_cast %266 : i32 to index
    %268 = memref.load %arg3[%267] : memref<144xf32, #tpu.memory_space<smem>>
    %269 = vector.broadcast %268 : f32 to vector<3x128xf32>
    %270 = arith.addf %260, %269 : vector<3x128xf32>
    %271 = arith.maximumf %246, %270 : vector<3x128xf32>
    %c2_i32_105 = arith.constant 2 : i32
    %272 = arith.muli %arg1, %c2_i32_105 : i32
    %c1_i32_106 = arith.constant 1 : i32
    %273 = arith.addi %272, %c1_i32_106 : i32
    %c4_i32_107 = arith.constant 4 : i32
    %274 = arith.muli %273, %c4_i32_107 : i32
    %275 = arith.addi %274, %234 : i32
    %c9_i32_108 = arith.constant 9 : i32
    %276 = arith.muli %275, %c9_i32_108 : i32
    %c1_i32_109 = arith.constant 1 : i32
    %277 = arith.addi %276, %c1_i32_109 : i32
    %278 = arith.index_cast %277 : i32 to index
    %279 = memref.load %arg3[%278] : memref<144xf32, #tpu.memory_space<smem>>
    %280 = vector.broadcast %279 : f32 to vector<3x128xf32>
    %281 = arith.addf %260, %280 : vector<3x128xf32>
    %282 = arith.maximumf %257, %281 : vector<3x128xf32>
    %283 = vector.extract_strided_slice %232 {offsets = [0, 2], sizes = [3, 126], strides = [1, 1]} : vector<4x128xf32> to vector<3x126xf32>
    %284 = vector.extract_strided_slice %232 {offsets = [1, 0], sizes = [3, 2], strides = [1, 1]} : vector<4x128xf32> to vector<3x2xf32>
    %285 = tpu.concatenate %283, %284 in 1 : vector<3x126xf32>, vector<3x2xf32> -> vector<3x128xf32>
    %c2_i32_110 = arith.constant 2 : i32
    %286 = arith.muli %arg1, %c2_i32_110 : i32
    %c0_i32_111 = arith.constant 0 : i32
    %287 = arith.addi %286, %c0_i32_111 : i32
    %c4_i32_112 = arith.constant 4 : i32
    %288 = arith.muli %287, %c4_i32_112 : i32
    %289 = arith.addi %288, %234 : i32
    %c9_i32_113 = arith.constant 9 : i32
    %290 = arith.muli %289, %c9_i32_113 : i32
    %c2_i32_114 = arith.constant 2 : i32
    %291 = arith.addi %290, %c2_i32_114 : i32
    %292 = arith.index_cast %291 : i32 to index
    %293 = memref.load %arg3[%292] : memref<144xf32, #tpu.memory_space<smem>>
    %294 = vector.broadcast %293 : f32 to vector<3x128xf32>
    %295 = arith.addf %285, %294 : vector<3x128xf32>
    %296 = arith.maximumf %271, %295 : vector<3x128xf32>
    %c2_i32_115 = arith.constant 2 : i32
    %297 = arith.muli %arg1, %c2_i32_115 : i32
    %c1_i32_116 = arith.constant 1 : i32
    %298 = arith.addi %297, %c1_i32_116 : i32
    %c4_i32_117 = arith.constant 4 : i32
    %299 = arith.muli %298, %c4_i32_117 : i32
    %300 = arith.addi %299, %234 : i32
    %c9_i32_118 = arith.constant 9 : i32
    %301 = arith.muli %300, %c9_i32_118 : i32
    %c2_i32_119 = arith.constant 2 : i32
    %302 = arith.addi %301, %c2_i32_119 : i32
    %303 = arith.index_cast %302 : i32 to index
    %304 = memref.load %arg3[%303] : memref<144xf32, #tpu.memory_space<smem>>
    %305 = vector.broadcast %304 : f32 to vector<3x128xf32>
    %306 = arith.addf %285, %305 : vector<3x128xf32>
    %307 = arith.maximumf %282, %306 : vector<3x128xf32>
    %308 = vector.extract_strided_slice %232 {offsets = [0, 18], sizes = [3, 110], strides = [1, 1]} : vector<4x128xf32> to vector<3x110xf32>
    %309 = vector.extract_strided_slice %232 {offsets = [1, 0], sizes = [3, 18], strides = [1, 1]} : vector<4x128xf32> to vector<3x18xf32>
    %310 = tpu.concatenate %308, %309 in 1 : vector<3x110xf32>, vector<3x18xf32> -> vector<3x128xf32>
    %c2_i32_120 = arith.constant 2 : i32
    %311 = arith.muli %arg1, %c2_i32_120 : i32
    %c0_i32_121 = arith.constant 0 : i32
    %312 = arith.addi %311, %c0_i32_121 : i32
    %c4_i32_122 = arith.constant 4 : i32
    %313 = arith.muli %312, %c4_i32_122 : i32
    %314 = arith.addi %313, %234 : i32
    %c9_i32_123 = arith.constant 9 : i32
    %315 = arith.muli %314, %c9_i32_123 : i32
    %c3_i32_124 = arith.constant 3 : i32
    %316 = arith.addi %315, %c3_i32_124 : i32
    %317 = arith.index_cast %316 : i32 to index
    %318 = memref.load %arg3[%317] : memref<144xf32, #tpu.memory_space<smem>>
    %319 = vector.broadcast %318 : f32 to vector<3x128xf32>
    %320 = arith.addf %310, %319 : vector<3x128xf32>
    %321 = arith.maximumf %296, %320 : vector<3x128xf32>
    %c2_i32_125 = arith.constant 2 : i32
    %322 = arith.muli %arg1, %c2_i32_125 : i32
    %c1_i32_126 = arith.constant 1 : i32
    %323 = arith.addi %322, %c1_i32_126 : i32
    %c4_i32_127 = arith.constant 4 : i32
    %324 = arith.muli %323, %c4_i32_127 : i32
    %325 = arith.addi %324, %234 : i32
    %c9_i32_128 = arith.constant 9 : i32
    %326 = arith.muli %325, %c9_i32_128 : i32
    %c3_i32_129 = arith.constant 3 : i32
    %327 = arith.addi %326, %c3_i32_129 : i32
    %328 = arith.index_cast %327 : i32 to index
    %329 = memref.load %arg3[%328] : memref<144xf32, #tpu.memory_space<smem>>
    %330 = vector.broadcast %329 : f32 to vector<3x128xf32>
    %331 = arith.addf %310, %330 : vector<3x128xf32>
    %332 = arith.maximumf %307, %331 : vector<3x128xf32>
    %333 = vector.extract_strided_slice %232 {offsets = [0, 19], sizes = [3, 109], strides = [1, 1]} : vector<4x128xf32> to vector<3x109xf32>
    %334 = vector.extract_strided_slice %232 {offsets = [1, 0], sizes = [3, 19], strides = [1, 1]} : vector<4x128xf32> to vector<3x19xf32>
    %335 = tpu.concatenate %333, %334 in 1 : vector<3x109xf32>, vector<3x19xf32> -> vector<3x128xf32>
    %c2_i32_130 = arith.constant 2 : i32
    %336 = arith.muli %arg1, %c2_i32_130 : i32
    %c0_i32_131 = arith.constant 0 : i32
    %337 = arith.addi %336, %c0_i32_131 : i32
    %c4_i32_132 = arith.constant 4 : i32
    %338 = arith.muli %337, %c4_i32_132 : i32
    %339 = arith.addi %338, %234 : i32
    %c9_i32_133 = arith.constant 9 : i32
    %340 = arith.muli %339, %c9_i32_133 : i32
    %c4_i32_134 = arith.constant 4 : i32
    %341 = arith.addi %340, %c4_i32_134 : i32
    %342 = arith.index_cast %341 : i32 to index
    %343 = memref.load %arg3[%342] : memref<144xf32, #tpu.memory_space<smem>>
    %344 = vector.broadcast %343 : f32 to vector<3x128xf32>
    %345 = arith.addf %335, %344 : vector<3x128xf32>
    %346 = arith.maximumf %321, %345 : vector<3x128xf32>
    %c2_i32_135 = arith.constant 2 : i32
    %347 = arith.muli %arg1, %c2_i32_135 : i32
    %c1_i32_136 = arith.constant 1 : i32
    %348 = arith.addi %347, %c1_i32_136 : i32
    %c4_i32_137 = arith.constant 4 : i32
    %349 = arith.muli %348, %c4_i32_137 : i32
    %350 = arith.addi %349, %234 : i32
    %c9_i32_138 = arith.constant 9 : i32
    %351 = arith.muli %350, %c9_i32_138 : i32
    %c4_i32_139 = arith.constant 4 : i32
    %352 = arith.addi %351, %c4_i32_139 : i32
    %353 = arith.index_cast %352 : i32 to index
    %354 = memref.load %arg3[%353] : memref<144xf32, #tpu.memory_space<smem>>
    %355 = vector.broadcast %354 : f32 to vector<3x128xf32>
    %356 = arith.addf %335, %355 : vector<3x128xf32>
    %357 = arith.maximumf %332, %356 : vector<3x128xf32>
    %358 = vector.extract_strided_slice %232 {offsets = [0, 20], sizes = [3, 108], strides = [1, 1]} : vector<4x128xf32> to vector<3x108xf32>
    %359 = vector.extract_strided_slice %232 {offsets = [1, 0], sizes = [3, 20], strides = [1, 1]} : vector<4x128xf32> to vector<3x20xf32>
    %360 = tpu.concatenate %358, %359 in 1 : vector<3x108xf32>, vector<3x20xf32> -> vector<3x128xf32>
    %c2_i32_140 = arith.constant 2 : i32
    %361 = arith.muli %arg1, %c2_i32_140 : i32
    %c0_i32_141 = arith.constant 0 : i32
    %362 = arith.addi %361, %c0_i32_141 : i32
    %c4_i32_142 = arith.constant 4 : i32
    %363 = arith.muli %362, %c4_i32_142 : i32
    %364 = arith.addi %363, %234 : i32
    %c9_i32_143 = arith.constant 9 : i32
    %365 = arith.muli %364, %c9_i32_143 : i32
    %c5_i32_144 = arith.constant 5 : i32
    %366 = arith.addi %365, %c5_i32_144 : i32
    %367 = arith.index_cast %366 : i32 to index
    %368 = memref.load %arg3[%367] : memref<144xf32, #tpu.memory_space<smem>>
    %369 = vector.broadcast %368 : f32 to vector<3x128xf32>
    %370 = arith.addf %360, %369 : vector<3x128xf32>
    %371 = arith.maximumf %346, %370 : vector<3x128xf32>
    %c2_i32_145 = arith.constant 2 : i32
    %372 = arith.muli %arg1, %c2_i32_145 : i32
    %c1_i32_146 = arith.constant 1 : i32
    %373 = arith.addi %372, %c1_i32_146 : i32
    %c4_i32_147 = arith.constant 4 : i32
    %374 = arith.muli %373, %c4_i32_147 : i32
    %375 = arith.addi %374, %234 : i32
    %c9_i32_148 = arith.constant 9 : i32
    %376 = arith.muli %375, %c9_i32_148 : i32
    %c5_i32_149 = arith.constant 5 : i32
    %377 = arith.addi %376, %c5_i32_149 : i32
    %378 = arith.index_cast %377 : i32 to index
    %379 = memref.load %arg3[%378] : memref<144xf32, #tpu.memory_space<smem>>
    %380 = vector.broadcast %379 : f32 to vector<3x128xf32>
    %381 = arith.addf %360, %380 : vector<3x128xf32>
    %382 = arith.maximumf %357, %381 : vector<3x128xf32>
    %383 = vector.extract_strided_slice %232 {offsets = [0, 36], sizes = [3, 92], strides = [1, 1]} : vector<4x128xf32> to vector<3x92xf32>
    %384 = vector.extract_strided_slice %232 {offsets = [1, 0], sizes = [3, 36], strides = [1, 1]} : vector<4x128xf32> to vector<3x36xf32>
    %385 = tpu.concatenate %383, %384 in 1 : vector<3x92xf32>, vector<3x36xf32> -> vector<3x128xf32>
    %c2_i32_150 = arith.constant 2 : i32
    %386 = arith.muli %arg1, %c2_i32_150 : i32
    %c0_i32_151 = arith.constant 0 : i32
    %387 = arith.addi %386, %c0_i32_151 : i32
    %c4_i32_152 = arith.constant 4 : i32
    %388 = arith.muli %387, %c4_i32_152 : i32
    %389 = arith.addi %388, %234 : i32
    %c9_i32_153 = arith.constant 9 : i32
    %390 = arith.muli %389, %c9_i32_153 : i32
    %c6_i32_154 = arith.constant 6 : i32
    %391 = arith.addi %390, %c6_i32_154 : i32
    %392 = arith.index_cast %391 : i32 to index
    %393 = memref.load %arg3[%392] : memref<144xf32, #tpu.memory_space<smem>>
    %394 = vector.broadcast %393 : f32 to vector<3x128xf32>
    %395 = arith.addf %385, %394 : vector<3x128xf32>
    %396 = arith.maximumf %371, %395 : vector<3x128xf32>
    %c2_i32_155 = arith.constant 2 : i32
    %397 = arith.muli %arg1, %c2_i32_155 : i32
    %c1_i32_156 = arith.constant 1 : i32
    %398 = arith.addi %397, %c1_i32_156 : i32
    %c4_i32_157 = arith.constant 4 : i32
    %399 = arith.muli %398, %c4_i32_157 : i32
    %400 = arith.addi %399, %234 : i32
    %c9_i32_158 = arith.constant 9 : i32
    %401 = arith.muli %400, %c9_i32_158 : i32
    %c6_i32_159 = arith.constant 6 : i32
    %402 = arith.addi %401, %c6_i32_159 : i32
    %403 = arith.index_cast %402 : i32 to index
    %404 = memref.load %arg3[%403] : memref<144xf32, #tpu.memory_space<smem>>
    %405 = vector.broadcast %404 : f32 to vector<3x128xf32>
    %406 = arith.addf %385, %405 : vector<3x128xf32>
    %407 = arith.maximumf %382, %406 : vector<3x128xf32>
    %408 = vector.extract_strided_slice %232 {offsets = [0, 37], sizes = [3, 91], strides = [1, 1]} : vector<4x128xf32> to vector<3x91xf32>
    %409 = vector.extract_strided_slice %232 {offsets = [1, 0], sizes = [3, 37], strides = [1, 1]} : vector<4x128xf32> to vector<3x37xf32>
    %410 = tpu.concatenate %408, %409 in 1 : vector<3x91xf32>, vector<3x37xf32> -> vector<3x128xf32>
    %c2_i32_160 = arith.constant 2 : i32
    %411 = arith.muli %arg1, %c2_i32_160 : i32
    %c0_i32_161 = arith.constant 0 : i32
    %412 = arith.addi %411, %c0_i32_161 : i32
    %c4_i32_162 = arith.constant 4 : i32
    %413 = arith.muli %412, %c4_i32_162 : i32
    %414 = arith.addi %413, %234 : i32
    %c9_i32_163 = arith.constant 9 : i32
    %415 = arith.muli %414, %c9_i32_163 : i32
    %c7_i32_164 = arith.constant 7 : i32
    %416 = arith.addi %415, %c7_i32_164 : i32
    %417 = arith.index_cast %416 : i32 to index
    %418 = memref.load %arg3[%417] : memref<144xf32, #tpu.memory_space<smem>>
    %419 = vector.broadcast %418 : f32 to vector<3x128xf32>
    %420 = arith.addf %410, %419 : vector<3x128xf32>
    %421 = arith.maximumf %396, %420 : vector<3x128xf32>
    %c2_i32_165 = arith.constant 2 : i32
    %422 = arith.muli %arg1, %c2_i32_165 : i32
    %c1_i32_166 = arith.constant 1 : i32
    %423 = arith.addi %422, %c1_i32_166 : i32
    %c4_i32_167 = arith.constant 4 : i32
    %424 = arith.muli %423, %c4_i32_167 : i32
    %425 = arith.addi %424, %234 : i32
    %c9_i32_168 = arith.constant 9 : i32
    %426 = arith.muli %425, %c9_i32_168 : i32
    %c7_i32_169 = arith.constant 7 : i32
    %427 = arith.addi %426, %c7_i32_169 : i32
    %428 = arith.index_cast %427 : i32 to index
    %429 = memref.load %arg3[%428] : memref<144xf32, #tpu.memory_space<smem>>
    %430 = vector.broadcast %429 : f32 to vector<3x128xf32>
    %431 = arith.addf %410, %430 : vector<3x128xf32>
    %432 = arith.maximumf %407, %431 : vector<3x128xf32>
    %433 = vector.extract_strided_slice %232 {offsets = [0, 38], sizes = [3, 90], strides = [1, 1]} : vector<4x128xf32> to vector<3x90xf32>
    %434 = vector.extract_strided_slice %232 {offsets = [1, 0], sizes = [3, 38], strides = [1, 1]} : vector<4x128xf32> to vector<3x38xf32>
    %435 = tpu.concatenate %433, %434 in 1 : vector<3x90xf32>, vector<3x38xf32> -> vector<3x128xf32>
    %c2_i32_170 = arith.constant 2 : i32
    %436 = arith.muli %arg1, %c2_i32_170 : i32
    %c0_i32_171 = arith.constant 0 : i32
    %437 = arith.addi %436, %c0_i32_171 : i32
    %c4_i32_172 = arith.constant 4 : i32
    %438 = arith.muli %437, %c4_i32_172 : i32
    %439 = arith.addi %438, %234 : i32
    %c9_i32_173 = arith.constant 9 : i32
    %440 = arith.muli %439, %c9_i32_173 : i32
    %c8_i32_174 = arith.constant 8 : i32
    %441 = arith.addi %440, %c8_i32_174 : i32
    %442 = arith.index_cast %441 : i32 to index
    %443 = memref.load %arg3[%442] : memref<144xf32, #tpu.memory_space<smem>>
    %444 = vector.broadcast %443 : f32 to vector<3x128xf32>
    %445 = arith.addf %435, %444 : vector<3x128xf32>
    %446 = arith.maximumf %421, %445 : vector<3x128xf32>
    %c2_i32_175 = arith.constant 2 : i32
    %447 = arith.muli %arg1, %c2_i32_175 : i32
    %c1_i32_176 = arith.constant 1 : i32
    %448 = arith.addi %447, %c1_i32_176 : i32
    %c4_i32_177 = arith.constant 4 : i32
    %449 = arith.muli %448, %c4_i32_177 : i32
    %450 = arith.addi %449, %234 : i32
    %c9_i32_178 = arith.constant 9 : i32
    %451 = arith.muli %450, %c9_i32_178 : i32
    %c8_i32_179 = arith.constant 8 : i32
    %452 = arith.addi %451, %c8_i32_179 : i32
    %453 = arith.index_cast %452 : i32 to index
    %454 = memref.load %arg3[%453] : memref<144xf32, #tpu.memory_space<smem>>
    %455 = vector.broadcast %454 : f32 to vector<3x128xf32>
    %456 = arith.addf %435, %455 : vector<3x128xf32>
    %457 = arith.maximumf %432, %456 : vector<3x128xf32>
    %c2_i32_180 = arith.constant 2 : i32
    %c0_181 = arith.constant 0 : index
    %458 = arith.index_cast %c2_i32_180 : i32 to index
    %c0_182 = arith.constant 0 : index
    %c0_183 = arith.constant 0 : index
    %459 = vector.load %arg4[%c0_181, %458, %c0_182, %c0_183] : memref<1x4x4x128xf32, #tpu.memory_space<vmem>>, vector<1x1x4x128xf32>
    %460 = vector.shape_cast %459 : vector<1x1x4x128xf32> to vector<4x128xf32>
    %c4_i32_184 = arith.constant 4 : i32
    %461 = arith.muli %arg2, %c4_i32_184 : i32
    %462 = arith.addi %461, %c2_i32_180 : i32
    %463 = vector.extract_strided_slice %460 {offsets = [0, 0], sizes = [3, 128], strides = [1, 1]} : vector<4x128xf32> to vector<3x128xf32>
    %c2_i32_185 = arith.constant 2 : i32
    %464 = arith.muli %arg1, %c2_i32_185 : i32
    %c0_i32_186 = arith.constant 0 : i32
    %465 = arith.addi %464, %c0_i32_186 : i32
    %c4_i32_187 = arith.constant 4 : i32
    %466 = arith.muli %465, %c4_i32_187 : i32
    %467 = arith.addi %466, %462 : i32
    %c9_i32_188 = arith.constant 9 : i32
    %468 = arith.muli %467, %c9_i32_188 : i32
    %c0_i32_189 = arith.constant 0 : i32
    %469 = arith.addi %468, %c0_i32_189 : i32
    %470 = arith.index_cast %469 : i32 to index
    %471 = memref.load %arg3[%470] : memref<144xf32, #tpu.memory_space<smem>>
    %472 = vector.broadcast %471 : f32 to vector<3x128xf32>
    %473 = arith.addf %463, %472 : vector<3x128xf32>
    %474 = arith.maximumf %446, %473 : vector<3x128xf32>
    %c2_i32_190 = arith.constant 2 : i32
    %475 = arith.muli %arg1, %c2_i32_190 : i32
    %c1_i32_191 = arith.constant 1 : i32
    %476 = arith.addi %475, %c1_i32_191 : i32
    %c4_i32_192 = arith.constant 4 : i32
    %477 = arith.muli %476, %c4_i32_192 : i32
    %478 = arith.addi %477, %462 : i32
    %c9_i32_193 = arith.constant 9 : i32
    %479 = arith.muli %478, %c9_i32_193 : i32
    %c0_i32_194 = arith.constant 0 : i32
    %480 = arith.addi %479, %c0_i32_194 : i32
    %481 = arith.index_cast %480 : i32 to index
    %482 = memref.load %arg3[%481] : memref<144xf32, #tpu.memory_space<smem>>
    %483 = vector.broadcast %482 : f32 to vector<3x128xf32>
    %484 = arith.addf %463, %483 : vector<3x128xf32>
    %485 = arith.maximumf %457, %484 : vector<3x128xf32>
    %486 = vector.extract_strided_slice %460 {offsets = [0, 1], sizes = [3, 127], strides = [1, 1]} : vector<4x128xf32> to vector<3x127xf32>
    %487 = vector.extract_strided_slice %460 {offsets = [1, 0], sizes = [3, 1], strides = [1, 1]} : vector<4x128xf32> to vector<3x1xf32>
    %488 = tpu.concatenate %486, %487 in 1 : vector<3x127xf32>, vector<3x1xf32> -> vector<3x128xf32>
    %c2_i32_195 = arith.constant 2 : i32
    %489 = arith.muli %arg1, %c2_i32_195 : i32
    %c0_i32_196 = arith.constant 0 : i32
    %490 = arith.addi %489, %c0_i32_196 : i32
    %c4_i32_197 = arith.constant 4 : i32
    %491 = arith.muli %490, %c4_i32_197 : i32
    %492 = arith.addi %491, %462 : i32
    %c9_i32_198 = arith.constant 9 : i32
    %493 = arith.muli %492, %c9_i32_198 : i32
    %c1_i32_199 = arith.constant 1 : i32
    %494 = arith.addi %493, %c1_i32_199 : i32
    %495 = arith.index_cast %494 : i32 to index
    %496 = memref.load %arg3[%495] : memref<144xf32, #tpu.memory_space<smem>>
    %497 = vector.broadcast %496 : f32 to vector<3x128xf32>
    %498 = arith.addf %488, %497 : vector<3x128xf32>
    %499 = arith.maximumf %474, %498 : vector<3x128xf32>
    %c2_i32_200 = arith.constant 2 : i32
    %500 = arith.muli %arg1, %c2_i32_200 : i32
    %c1_i32_201 = arith.constant 1 : i32
    %501 = arith.addi %500, %c1_i32_201 : i32
    %c4_i32_202 = arith.constant 4 : i32
    %502 = arith.muli %501, %c4_i32_202 : i32
    %503 = arith.addi %502, %462 : i32
    %c9_i32_203 = arith.constant 9 : i32
    %504 = arith.muli %503, %c9_i32_203 : i32
    %c1_i32_204 = arith.constant 1 : i32
    %505 = arith.addi %504, %c1_i32_204 : i32
    %506 = arith.index_cast %505 : i32 to index
    %507 = memref.load %arg3[%506] : memref<144xf32, #tpu.memory_space<smem>>
    %508 = vector.broadcast %507 : f32 to vector<3x128xf32>
    %509 = arith.addf %488, %508 : vector<3x128xf32>
    %510 = arith.maximumf %485, %509 : vector<3x128xf32>
    %511 = vector.extract_strided_slice %460 {offsets = [0, 2], sizes = [3, 126], strides = [1, 1]} : vector<4x128xf32> to vector<3x126xf32>
    %512 = vector.extract_strided_slice %460 {offsets = [1, 0], sizes = [3, 2], strides = [1, 1]} : vector<4x128xf32> to vector<3x2xf32>
    %513 = tpu.concatenate %511, %512 in 1 : vector<3x126xf32>, vector<3x2xf32> -> vector<3x128xf32>
    %c2_i32_205 = arith.constant 2 : i32
    %514 = arith.muli %arg1, %c2_i32_205 : i32
    %c0_i32_206 = arith.constant 0 : i32
    %515 = arith.addi %514, %c0_i32_206 : i32
    %c4_i32_207 = arith.constant 4 : i32
    %516 = arith.muli %515, %c4_i32_207 : i32
    %517 = arith.addi %516, %462 : i32
    %c9_i32_208 = arith.constant 9 : i32
    %518 = arith.muli %517, %c9_i32_208 : i32
    %c2_i32_209 = arith.constant 2 : i32
    %519 = arith.addi %518, %c2_i32_209 : i32
    %520 = arith.index_cast %519 : i32 to index
    %521 = memref.load %arg3[%520] : memref<144xf32, #tpu.memory_space<smem>>
    %522 = vector.broadcast %521 : f32 to vector<3x128xf32>
    %523 = arith.addf %513, %522 : vector<3x128xf32>
    %524 = arith.maximumf %499, %523 : vector<3x128xf32>
    %c2_i32_210 = arith.constant 2 : i32
    %525 = arith.muli %arg1, %c2_i32_210 : i32
    %c1_i32_211 = arith.constant 1 : i32
    %526 = arith.addi %525, %c1_i32_211 : i32
    %c4_i32_212 = arith.constant 4 : i32
    %527 = arith.muli %526, %c4_i32_212 : i32
    %528 = arith.addi %527, %462 : i32
    %c9_i32_213 = arith.constant 9 : i32
    %529 = arith.muli %528, %c9_i32_213 : i32
    %c2_i32_214 = arith.constant 2 : i32
    %530 = arith.addi %529, %c2_i32_214 : i32
    %531 = arith.index_cast %530 : i32 to index
    %532 = memref.load %arg3[%531] : memref<144xf32, #tpu.memory_space<smem>>
    %533 = vector.broadcast %532 : f32 to vector<3x128xf32>
    %534 = arith.addf %513, %533 : vector<3x128xf32>
    %535 = arith.maximumf %510, %534 : vector<3x128xf32>
    %536 = vector.extract_strided_slice %460 {offsets = [0, 18], sizes = [3, 110], strides = [1, 1]} : vector<4x128xf32> to vector<3x110xf32>
    %537 = vector.extract_strided_slice %460 {offsets = [1, 0], sizes = [3, 18], strides = [1, 1]} : vector<4x128xf32> to vector<3x18xf32>
    %538 = tpu.concatenate %536, %537 in 1 : vector<3x110xf32>, vector<3x18xf32> -> vector<3x128xf32>
    %c2_i32_215 = arith.constant 2 : i32
    %539 = arith.muli %arg1, %c2_i32_215 : i32
    %c0_i32_216 = arith.constant 0 : i32
    %540 = arith.addi %539, %c0_i32_216 : i32
    %c4_i32_217 = arith.constant 4 : i32
    %541 = arith.muli %540, %c4_i32_217 : i32
    %542 = arith.addi %541, %462 : i32
    %c9_i32_218 = arith.constant 9 : i32
    %543 = arith.muli %542, %c9_i32_218 : i32
    %c3_i32_219 = arith.constant 3 : i32
    %544 = arith.addi %543, %c3_i32_219 : i32
    %545 = arith.index_cast %544 : i32 to index
    %546 = memref.load %arg3[%545] : memref<144xf32, #tpu.memory_space<smem>>
    %547 = vector.broadcast %546 : f32 to vector<3x128xf32>
    %548 = arith.addf %538, %547 : vector<3x128xf32>
    %549 = arith.maximumf %524, %548 : vector<3x128xf32>
    %c2_i32_220 = arith.constant 2 : i32
    %550 = arith.muli %arg1, %c2_i32_220 : i32
    %c1_i32_221 = arith.constant 1 : i32
    %551 = arith.addi %550, %c1_i32_221 : i32
    %c4_i32_222 = arith.constant 4 : i32
    %552 = arith.muli %551, %c4_i32_222 : i32
    %553 = arith.addi %552, %462 : i32
    %c9_i32_223 = arith.constant 9 : i32
    %554 = arith.muli %553, %c9_i32_223 : i32
    %c3_i32_224 = arith.constant 3 : i32
    %555 = arith.addi %554, %c3_i32_224 : i32
    %556 = arith.index_cast %555 : i32 to index
    %557 = memref.load %arg3[%556] : memref<144xf32, #tpu.memory_space<smem>>
    %558 = vector.broadcast %557 : f32 to vector<3x128xf32>
    %559 = arith.addf %538, %558 : vector<3x128xf32>
    %560 = arith.maximumf %535, %559 : vector<3x128xf32>
    %561 = vector.extract_strided_slice %460 {offsets = [0, 19], sizes = [3, 109], strides = [1, 1]} : vector<4x128xf32> to vector<3x109xf32>
    %562 = vector.extract_strided_slice %460 {offsets = [1, 0], sizes = [3, 19], strides = [1, 1]} : vector<4x128xf32> to vector<3x19xf32>
    %563 = tpu.concatenate %561, %562 in 1 : vector<3x109xf32>, vector<3x19xf32> -> vector<3x128xf32>
    %c2_i32_225 = arith.constant 2 : i32
    %564 = arith.muli %arg1, %c2_i32_225 : i32
    %c0_i32_226 = arith.constant 0 : i32
    %565 = arith.addi %564, %c0_i32_226 : i32
    %c4_i32_227 = arith.constant 4 : i32
    %566 = arith.muli %565, %c4_i32_227 : i32
    %567 = arith.addi %566, %462 : i32
    %c9_i32_228 = arith.constant 9 : i32
    %568 = arith.muli %567, %c9_i32_228 : i32
    %c4_i32_229 = arith.constant 4 : i32
    %569 = arith.addi %568, %c4_i32_229 : i32
    %570 = arith.index_cast %569 : i32 to index
    %571 = memref.load %arg3[%570] : memref<144xf32, #tpu.memory_space<smem>>
    %572 = vector.broadcast %571 : f32 to vector<3x128xf32>
    %573 = arith.addf %563, %572 : vector<3x128xf32>
    %574 = arith.maximumf %549, %573 : vector<3x128xf32>
    %c2_i32_230 = arith.constant 2 : i32
    %575 = arith.muli %arg1, %c2_i32_230 : i32
    %c1_i32_231 = arith.constant 1 : i32
    %576 = arith.addi %575, %c1_i32_231 : i32
    %c4_i32_232 = arith.constant 4 : i32
    %577 = arith.muli %576, %c4_i32_232 : i32
    %578 = arith.addi %577, %462 : i32
    %c9_i32_233 = arith.constant 9 : i32
    %579 = arith.muli %578, %c9_i32_233 : i32
    %c4_i32_234 = arith.constant 4 : i32
    %580 = arith.addi %579, %c4_i32_234 : i32
    %581 = arith.index_cast %580 : i32 to index
    %582 = memref.load %arg3[%581] : memref<144xf32, #tpu.memory_space<smem>>
    %583 = vector.broadcast %582 : f32 to vector<3x128xf32>
    %584 = arith.addf %563, %583 : vector<3x128xf32>
    %585 = arith.maximumf %560, %584 : vector<3x128xf32>
    %586 = vector.extract_strided_slice %460 {offsets = [0, 20], sizes = [3, 108], strides = [1, 1]} : vector<4x128xf32> to vector<3x108xf32>
    %587 = vector.extract_strided_slice %460 {offsets = [1, 0], sizes = [3, 20], strides = [1, 1]} : vector<4x128xf32> to vector<3x20xf32>
    %588 = tpu.concatenate %586, %587 in 1 : vector<3x108xf32>, vector<3x20xf32> -> vector<3x128xf32>
    %c2_i32_235 = arith.constant 2 : i32
    %589 = arith.muli %arg1, %c2_i32_235 : i32
    %c0_i32_236 = arith.constant 0 : i32
    %590 = arith.addi %589, %c0_i32_236 : i32
    %c4_i32_237 = arith.constant 4 : i32
    %591 = arith.muli %590, %c4_i32_237 : i32
    %592 = arith.addi %591, %462 : i32
    %c9_i32_238 = arith.constant 9 : i32
    %593 = arith.muli %592, %c9_i32_238 : i32
    %c5_i32_239 = arith.constant 5 : i32
    %594 = arith.addi %593, %c5_i32_239 : i32
    %595 = arith.index_cast %594 : i32 to index
    %596 = memref.load %arg3[%595] : memref<144xf32, #tpu.memory_space<smem>>
    %597 = vector.broadcast %596 : f32 to vector<3x128xf32>
    %598 = arith.addf %588, %597 : vector<3x128xf32>
    %599 = arith.maximumf %574, %598 : vector<3x128xf32>
    %c2_i32_240 = arith.constant 2 : i32
    %600 = arith.muli %arg1, %c2_i32_240 : i32
    %c1_i32_241 = arith.constant 1 : i32
    %601 = arith.addi %600, %c1_i32_241 : i32
    %c4_i32_242 = arith.constant 4 : i32
    %602 = arith.muli %601, %c4_i32_242 : i32
    %603 = arith.addi %602, %462 : i32
    %c9_i32_243 = arith.constant 9 : i32
    %604 = arith.muli %603, %c9_i32_243 : i32
    %c5_i32_244 = arith.constant 5 : i32
    %605 = arith.addi %604, %c5_i32_244 : i32
    %606 = arith.index_cast %605 : i32 to index
    %607 = memref.load %arg3[%606] : memref<144xf32, #tpu.memory_space<smem>>
    %608 = vector.broadcast %607 : f32 to vector<3x128xf32>
    %609 = arith.addf %588, %608 : vector<3x128xf32>
    %610 = arith.maximumf %585, %609 : vector<3x128xf32>
    %611 = vector.extract_strided_slice %460 {offsets = [0, 36], sizes = [3, 92], strides = [1, 1]} : vector<4x128xf32> to vector<3x92xf32>
    %612 = vector.extract_strided_slice %460 {offsets = [1, 0], sizes = [3, 36], strides = [1, 1]} : vector<4x128xf32> to vector<3x36xf32>
    %613 = tpu.concatenate %611, %612 in 1 : vector<3x92xf32>, vector<3x36xf32> -> vector<3x128xf32>
    %c2_i32_245 = arith.constant 2 : i32
    %614 = arith.muli %arg1, %c2_i32_245 : i32
    %c0_i32_246 = arith.constant 0 : i32
    %615 = arith.addi %614, %c0_i32_246 : i32
    %c4_i32_247 = arith.constant 4 : i32
    %616 = arith.muli %615, %c4_i32_247 : i32
    %617 = arith.addi %616, %462 : i32
    %c9_i32_248 = arith.constant 9 : i32
    %618 = arith.muli %617, %c9_i32_248 : i32
    %c6_i32_249 = arith.constant 6 : i32
    %619 = arith.addi %618, %c6_i32_249 : i32
    %620 = arith.index_cast %619 : i32 to index
    %621 = memref.load %arg3[%620] : memref<144xf32, #tpu.memory_space<smem>>
    %622 = vector.broadcast %621 : f32 to vector<3x128xf32>
    %623 = arith.addf %613, %622 : vector<3x128xf32>
    %624 = arith.maximumf %599, %623 : vector<3x128xf32>
    %c2_i32_250 = arith.constant 2 : i32
    %625 = arith.muli %arg1, %c2_i32_250 : i32
    %c1_i32_251 = arith.constant 1 : i32
    %626 = arith.addi %625, %c1_i32_251 : i32
    %c4_i32_252 = arith.constant 4 : i32
    %627 = arith.muli %626, %c4_i32_252 : i32
    %628 = arith.addi %627, %462 : i32
    %c9_i32_253 = arith.constant 9 : i32
    %629 = arith.muli %628, %c9_i32_253 : i32
    %c6_i32_254 = arith.constant 6 : i32
    %630 = arith.addi %629, %c6_i32_254 : i32
    %631 = arith.index_cast %630 : i32 to index
    %632 = memref.load %arg3[%631] : memref<144xf32, #tpu.memory_space<smem>>
    %633 = vector.broadcast %632 : f32 to vector<3x128xf32>
    %634 = arith.addf %613, %633 : vector<3x128xf32>
    %635 = arith.maximumf %610, %634 : vector<3x128xf32>
    %636 = vector.extract_strided_slice %460 {offsets = [0, 37], sizes = [3, 91], strides = [1, 1]} : vector<4x128xf32> to vector<3x91xf32>
    %637 = vector.extract_strided_slice %460 {offsets = [1, 0], sizes = [3, 37], strides = [1, 1]} : vector<4x128xf32> to vector<3x37xf32>
    %638 = tpu.concatenate %636, %637 in 1 : vector<3x91xf32>, vector<3x37xf32> -> vector<3x128xf32>
    %c2_i32_255 = arith.constant 2 : i32
    %639 = arith.muli %arg1, %c2_i32_255 : i32
    %c0_i32_256 = arith.constant 0 : i32
    %640 = arith.addi %639, %c0_i32_256 : i32
    %c4_i32_257 = arith.constant 4 : i32
    %641 = arith.muli %640, %c4_i32_257 : i32
    %642 = arith.addi %641, %462 : i32
    %c9_i32_258 = arith.constant 9 : i32
    %643 = arith.muli %642, %c9_i32_258 : i32
    %c7_i32_259 = arith.constant 7 : i32
    %644 = arith.addi %643, %c7_i32_259 : i32
    %645 = arith.index_cast %644 : i32 to index
    %646 = memref.load %arg3[%645] : memref<144xf32, #tpu.memory_space<smem>>
    %647 = vector.broadcast %646 : f32 to vector<3x128xf32>
    %648 = arith.addf %638, %647 : vector<3x128xf32>
    %649 = arith.maximumf %624, %648 : vector<3x128xf32>
    %c2_i32_260 = arith.constant 2 : i32
    %650 = arith.muli %arg1, %c2_i32_260 : i32
    %c1_i32_261 = arith.constant 1 : i32
    %651 = arith.addi %650, %c1_i32_261 : i32
    %c4_i32_262 = arith.constant 4 : i32
    %652 = arith.muli %651, %c4_i32_262 : i32
    %653 = arith.addi %652, %462 : i32
    %c9_i32_263 = arith.constant 9 : i32
    %654 = arith.muli %653, %c9_i32_263 : i32
    %c7_i32_264 = arith.constant 7 : i32
    %655 = arith.addi %654, %c7_i32_264 : i32
    %656 = arith.index_cast %655 : i32 to index
    %657 = memref.load %arg3[%656] : memref<144xf32, #tpu.memory_space<smem>>
    %658 = vector.broadcast %657 : f32 to vector<3x128xf32>
    %659 = arith.addf %638, %658 : vector<3x128xf32>
    %660 = arith.maximumf %635, %659 : vector<3x128xf32>
    %661 = vector.extract_strided_slice %460 {offsets = [0, 38], sizes = [3, 90], strides = [1, 1]} : vector<4x128xf32> to vector<3x90xf32>
    %662 = vector.extract_strided_slice %460 {offsets = [1, 0], sizes = [3, 38], strides = [1, 1]} : vector<4x128xf32> to vector<3x38xf32>
    %663 = tpu.concatenate %661, %662 in 1 : vector<3x90xf32>, vector<3x38xf32> -> vector<3x128xf32>
    %c2_i32_265 = arith.constant 2 : i32
    %664 = arith.muli %arg1, %c2_i32_265 : i32
    %c0_i32_266 = arith.constant 0 : i32
    %665 = arith.addi %664, %c0_i32_266 : i32
    %c4_i32_267 = arith.constant 4 : i32
    %666 = arith.muli %665, %c4_i32_267 : i32
    %667 = arith.addi %666, %462 : i32
    %c9_i32_268 = arith.constant 9 : i32
    %668 = arith.muli %667, %c9_i32_268 : i32
    %c8_i32_269 = arith.constant 8 : i32
    %669 = arith.addi %668, %c8_i32_269 : i32
    %670 = arith.index_cast %669 : i32 to index
    %671 = memref.load %arg3[%670] : memref<144xf32, #tpu.memory_space<smem>>
    %672 = vector.broadcast %671 : f32 to vector<3x128xf32>
    %673 = arith.addf %663, %672 : vector<3x128xf32>
    %674 = arith.maximumf %649, %673 : vector<3x128xf32>
    %c2_i32_270 = arith.constant 2 : i32
    %675 = arith.muli %arg1, %c2_i32_270 : i32
    %c1_i32_271 = arith.constant 1 : i32
    %676 = arith.addi %675, %c1_i32_271 : i32
    %c4_i32_272 = arith.constant 4 : i32
    %677 = arith.muli %676, %c4_i32_272 : i32
    %678 = arith.addi %677, %462 : i32
    %c9_i32_273 = arith.constant 9 : i32
    %679 = arith.muli %678, %c9_i32_273 : i32
    %c8_i32_274 = arith.constant 8 : i32
    %680 = arith.addi %679, %c8_i32_274 : i32
    %681 = arith.index_cast %680 : i32 to index
    %682 = memref.load %arg3[%681] : memref<144xf32, #tpu.memory_space<smem>>
    %683 = vector.broadcast %682 : f32 to vector<3x128xf32>
    %684 = arith.addf %663, %683 : vector<3x128xf32>
    %685 = arith.maximumf %660, %684 : vector<3x128xf32>
    %c3_i32_275 = arith.constant 3 : i32
    %c0_276 = arith.constant 0 : index
    %686 = arith.index_cast %c3_i32_275 : i32 to index
    %c0_277 = arith.constant 0 : index
    %c0_278 = arith.constant 0 : index
    %687 = vector.load %arg4[%c0_276, %686, %c0_277, %c0_278] : memref<1x4x4x128xf32, #tpu.memory_space<vmem>>, vector<1x1x4x128xf32>
    %688 = vector.shape_cast %687 : vector<1x1x4x128xf32> to vector<4x128xf32>
    %c4_i32_279 = arith.constant 4 : i32
    %689 = arith.muli %arg2, %c4_i32_279 : i32
    %690 = arith.addi %689, %c3_i32_275 : i32
    %691 = vector.extract_strided_slice %688 {offsets = [0, 0], sizes = [3, 128], strides = [1, 1]} : vector<4x128xf32> to vector<3x128xf32>
    %c2_i32_280 = arith.constant 2 : i32
    %692 = arith.muli %arg1, %c2_i32_280 : i32
    %c0_i32_281 = arith.constant 0 : i32
    %693 = arith.addi %692, %c0_i32_281 : i32
    %c4_i32_282 = arith.constant 4 : i32
    %694 = arith.muli %693, %c4_i32_282 : i32
    %695 = arith.addi %694, %690 : i32
    %c9_i32_283 = arith.constant 9 : i32
    %696 = arith.muli %695, %c9_i32_283 : i32
    %c0_i32_284 = arith.constant 0 : i32
    %697 = arith.addi %696, %c0_i32_284 : i32
    %698 = arith.index_cast %697 : i32 to index
    %699 = memref.load %arg3[%698] : memref<144xf32, #tpu.memory_space<smem>>
    %700 = vector.broadcast %699 : f32 to vector<3x128xf32>
    %701 = arith.addf %691, %700 : vector<3x128xf32>
    %702 = arith.maximumf %674, %701 : vector<3x128xf32>
    %c2_i32_285 = arith.constant 2 : i32
    %703 = arith.muli %arg1, %c2_i32_285 : i32
    %c1_i32_286 = arith.constant 1 : i32
    %704 = arith.addi %703, %c1_i32_286 : i32
    %c4_i32_287 = arith.constant 4 : i32
    %705 = arith.muli %704, %c4_i32_287 : i32
    %706 = arith.addi %705, %690 : i32
    %c9_i32_288 = arith.constant 9 : i32
    %707 = arith.muli %706, %c9_i32_288 : i32
    %c0_i32_289 = arith.constant 0 : i32
    %708 = arith.addi %707, %c0_i32_289 : i32
    %709 = arith.index_cast %708 : i32 to index
    %710 = memref.load %arg3[%709] : memref<144xf32, #tpu.memory_space<smem>>
    %711 = vector.broadcast %710 : f32 to vector<3x128xf32>
    %712 = arith.addf %691, %711 : vector<3x128xf32>
    %713 = arith.maximumf %685, %712 : vector<3x128xf32>
    %714 = vector.extract_strided_slice %688 {offsets = [0, 1], sizes = [3, 127], strides = [1, 1]} : vector<4x128xf32> to vector<3x127xf32>
    %715 = vector.extract_strided_slice %688 {offsets = [1, 0], sizes = [3, 1], strides = [1, 1]} : vector<4x128xf32> to vector<3x1xf32>
    %716 = tpu.concatenate %714, %715 in 1 : vector<3x127xf32>, vector<3x1xf32> -> vector<3x128xf32>
    %c2_i32_290 = arith.constant 2 : i32
    %717 = arith.muli %arg1, %c2_i32_290 : i32
    %c0_i32_291 = arith.constant 0 : i32
    %718 = arith.addi %717, %c0_i32_291 : i32
    %c4_i32_292 = arith.constant 4 : i32
    %719 = arith.muli %718, %c4_i32_292 : i32
    %720 = arith.addi %719, %690 : i32
    %c9_i32_293 = arith.constant 9 : i32
    %721 = arith.muli %720, %c9_i32_293 : i32
    %c1_i32_294 = arith.constant 1 : i32
    %722 = arith.addi %721, %c1_i32_294 : i32
    %723 = arith.index_cast %722 : i32 to index
    %724 = memref.load %arg3[%723] : memref<144xf32, #tpu.memory_space<smem>>
    %725 = vector.broadcast %724 : f32 to vector<3x128xf32>
    %726 = arith.addf %716, %725 : vector<3x128xf32>
    %727 = arith.maximumf %702, %726 : vector<3x128xf32>
    %c2_i32_295 = arith.constant 2 : i32
    %728 = arith.muli %arg1, %c2_i32_295 : i32
    %c1_i32_296 = arith.constant 1 : i32
    %729 = arith.addi %728, %c1_i32_296 : i32
    %c4_i32_297 = arith.constant 4 : i32
    %730 = arith.muli %729, %c4_i32_297 : i32
    %731 = arith.addi %730, %690 : i32
    %c9_i32_298 = arith.constant 9 : i32
    %732 = arith.muli %731, %c9_i32_298 : i32
    %c1_i32_299 = arith.constant 1 : i32
    %733 = arith.addi %732, %c1_i32_299 : i32
    %734 = arith.index_cast %733 : i32 to index
    %735 = memref.load %arg3[%734] : memref<144xf32, #tpu.memory_space<smem>>
    %736 = vector.broadcast %735 : f32 to vector<3x128xf32>
    %737 = arith.addf %716, %736 : vector<3x128xf32>
    %738 = arith.maximumf %713, %737 : vector<3x128xf32>
    %739 = vector.extract_strided_slice %688 {offsets = [0, 2], sizes = [3, 126], strides = [1, 1]} : vector<4x128xf32> to vector<3x126xf32>
    %740 = vector.extract_strided_slice %688 {offsets = [1, 0], sizes = [3, 2], strides = [1, 1]} : vector<4x128xf32> to vector<3x2xf32>
    %741 = tpu.concatenate %739, %740 in 1 : vector<3x126xf32>, vector<3x2xf32> -> vector<3x128xf32>
    %c2_i32_300 = arith.constant 2 : i32
    %742 = arith.muli %arg1, %c2_i32_300 : i32
    %c0_i32_301 = arith.constant 0 : i32
    %743 = arith.addi %742, %c0_i32_301 : i32
    %c4_i32_302 = arith.constant 4 : i32
    %744 = arith.muli %743, %c4_i32_302 : i32
    %745 = arith.addi %744, %690 : i32
    %c9_i32_303 = arith.constant 9 : i32
    %746 = arith.muli %745, %c9_i32_303 : i32
    %c2_i32_304 = arith.constant 2 : i32
    %747 = arith.addi %746, %c2_i32_304 : i32
    %748 = arith.index_cast %747 : i32 to index
    %749 = memref.load %arg3[%748] : memref<144xf32, #tpu.memory_space<smem>>
    %750 = vector.broadcast %749 : f32 to vector<3x128xf32>
    %751 = arith.addf %741, %750 : vector<3x128xf32>
    %752 = arith.maximumf %727, %751 : vector<3x128xf32>
    %c2_i32_305 = arith.constant 2 : i32
    %753 = arith.muli %arg1, %c2_i32_305 : i32
    %c1_i32_306 = arith.constant 1 : i32
    %754 = arith.addi %753, %c1_i32_306 : i32
    %c4_i32_307 = arith.constant 4 : i32
    %755 = arith.muli %754, %c4_i32_307 : i32
    %756 = arith.addi %755, %690 : i32
    %c9_i32_308 = arith.constant 9 : i32
    %757 = arith.muli %756, %c9_i32_308 : i32
    %c2_i32_309 = arith.constant 2 : i32
    %758 = arith.addi %757, %c2_i32_309 : i32
    %759 = arith.index_cast %758 : i32 to index
    %760 = memref.load %arg3[%759] : memref<144xf32, #tpu.memory_space<smem>>
    %761 = vector.broadcast %760 : f32 to vector<3x128xf32>
    %762 = arith.addf %741, %761 : vector<3x128xf32>
    %763 = arith.maximumf %738, %762 : vector<3x128xf32>
    %764 = vector.extract_strided_slice %688 {offsets = [0, 18], sizes = [3, 110], strides = [1, 1]} : vector<4x128xf32> to vector<3x110xf32>
    %765 = vector.extract_strided_slice %688 {offsets = [1, 0], sizes = [3, 18], strides = [1, 1]} : vector<4x128xf32> to vector<3x18xf32>
    %766 = tpu.concatenate %764, %765 in 1 : vector<3x110xf32>, vector<3x18xf32> -> vector<3x128xf32>
    %c2_i32_310 = arith.constant 2 : i32
    %767 = arith.muli %arg1, %c2_i32_310 : i32
    %c0_i32_311 = arith.constant 0 : i32
    %768 = arith.addi %767, %c0_i32_311 : i32
    %c4_i32_312 = arith.constant 4 : i32
    %769 = arith.muli %768, %c4_i32_312 : i32
    %770 = arith.addi %769, %690 : i32
    %c9_i32_313 = arith.constant 9 : i32
    %771 = arith.muli %770, %c9_i32_313 : i32
    %c3_i32_314 = arith.constant 3 : i32
    %772 = arith.addi %771, %c3_i32_314 : i32
    %773 = arith.index_cast %772 : i32 to index
    %774 = memref.load %arg3[%773] : memref<144xf32, #tpu.memory_space<smem>>
    %775 = vector.broadcast %774 : f32 to vector<3x128xf32>
    %776 = arith.addf %766, %775 : vector<3x128xf32>
    %777 = arith.maximumf %752, %776 : vector<3x128xf32>
    %c2_i32_315 = arith.constant 2 : i32
    %778 = arith.muli %arg1, %c2_i32_315 : i32
    %c1_i32_316 = arith.constant 1 : i32
    %779 = arith.addi %778, %c1_i32_316 : i32
    %c4_i32_317 = arith.constant 4 : i32
    %780 = arith.muli %779, %c4_i32_317 : i32
    %781 = arith.addi %780, %690 : i32
    %c9_i32_318 = arith.constant 9 : i32
    %782 = arith.muli %781, %c9_i32_318 : i32
    %c3_i32_319 = arith.constant 3 : i32
    %783 = arith.addi %782, %c3_i32_319 : i32
    %784 = arith.index_cast %783 : i32 to index
    %785 = memref.load %arg3[%784] : memref<144xf32, #tpu.memory_space<smem>>
    %786 = vector.broadcast %785 : f32 to vector<3x128xf32>
    %787 = arith.addf %766, %786 : vector<3x128xf32>
    %788 = arith.maximumf %763, %787 : vector<3x128xf32>
    %789 = vector.extract_strided_slice %688 {offsets = [0, 19], sizes = [3, 109], strides = [1, 1]} : vector<4x128xf32> to vector<3x109xf32>
    %790 = vector.extract_strided_slice %688 {offsets = [1, 0], sizes = [3, 19], strides = [1, 1]} : vector<4x128xf32> to vector<3x19xf32>
    %791 = tpu.concatenate %789, %790 in 1 : vector<3x109xf32>, vector<3x19xf32> -> vector<3x128xf32>
    %c2_i32_320 = arith.constant 2 : i32
    %792 = arith.muli %arg1, %c2_i32_320 : i32
    %c0_i32_321 = arith.constant 0 : i32
    %793 = arith.addi %792, %c0_i32_321 : i32
    %c4_i32_322 = arith.constant 4 : i32
    %794 = arith.muli %793, %c4_i32_322 : i32
    %795 = arith.addi %794, %690 : i32
    %c9_i32_323 = arith.constant 9 : i32
    %796 = arith.muli %795, %c9_i32_323 : i32
    %c4_i32_324 = arith.constant 4 : i32
    %797 = arith.addi %796, %c4_i32_324 : i32
    %798 = arith.index_cast %797 : i32 to index
    %799 = memref.load %arg3[%798] : memref<144xf32, #tpu.memory_space<smem>>
    %800 = vector.broadcast %799 : f32 to vector<3x128xf32>
    %801 = arith.addf %791, %800 : vector<3x128xf32>
    %802 = arith.maximumf %777, %801 : vector<3x128xf32>
    %c2_i32_325 = arith.constant 2 : i32
    %803 = arith.muli %arg1, %c2_i32_325 : i32
    %c1_i32_326 = arith.constant 1 : i32
    %804 = arith.addi %803, %c1_i32_326 : i32
    %c4_i32_327 = arith.constant 4 : i32
    %805 = arith.muli %804, %c4_i32_327 : i32
    %806 = arith.addi %805, %690 : i32
    %c9_i32_328 = arith.constant 9 : i32
    %807 = arith.muli %806, %c9_i32_328 : i32
    %c4_i32_329 = arith.constant 4 : i32
    %808 = arith.addi %807, %c4_i32_329 : i32
    %809 = arith.index_cast %808 : i32 to index
    %810 = memref.load %arg3[%809] : memref<144xf32, #tpu.memory_space<smem>>
    %811 = vector.broadcast %810 : f32 to vector<3x128xf32>
    %812 = arith.addf %791, %811 : vector<3x128xf32>
    %813 = arith.maximumf %788, %812 : vector<3x128xf32>
    %814 = vector.extract_strided_slice %688 {offsets = [0, 20], sizes = [3, 108], strides = [1, 1]} : vector<4x128xf32> to vector<3x108xf32>
    %815 = vector.extract_strided_slice %688 {offsets = [1, 0], sizes = [3, 20], strides = [1, 1]} : vector<4x128xf32> to vector<3x20xf32>
    %816 = tpu.concatenate %814, %815 in 1 : vector<3x108xf32>, vector<3x20xf32> -> vector<3x128xf32>
    %c2_i32_330 = arith.constant 2 : i32
    %817 = arith.muli %arg1, %c2_i32_330 : i32
    %c0_i32_331 = arith.constant 0 : i32
    %818 = arith.addi %817, %c0_i32_331 : i32
    %c4_i32_332 = arith.constant 4 : i32
    %819 = arith.muli %818, %c4_i32_332 : i32
    %820 = arith.addi %819, %690 : i32
    %c9_i32_333 = arith.constant 9 : i32
    %821 = arith.muli %820, %c9_i32_333 : i32
    %c5_i32_334 = arith.constant 5 : i32
    %822 = arith.addi %821, %c5_i32_334 : i32
    %823 = arith.index_cast %822 : i32 to index
    %824 = memref.load %arg3[%823] : memref<144xf32, #tpu.memory_space<smem>>
    %825 = vector.broadcast %824 : f32 to vector<3x128xf32>
    %826 = arith.addf %816, %825 : vector<3x128xf32>
    %827 = arith.maximumf %802, %826 : vector<3x128xf32>
    %c2_i32_335 = arith.constant 2 : i32
    %828 = arith.muli %arg1, %c2_i32_335 : i32
    %c1_i32_336 = arith.constant 1 : i32
    %829 = arith.addi %828, %c1_i32_336 : i32
    %c4_i32_337 = arith.constant 4 : i32
    %830 = arith.muli %829, %c4_i32_337 : i32
    %831 = arith.addi %830, %690 : i32
    %c9_i32_338 = arith.constant 9 : i32
    %832 = arith.muli %831, %c9_i32_338 : i32
    %c5_i32_339 = arith.constant 5 : i32
    %833 = arith.addi %832, %c5_i32_339 : i32
    %834 = arith.index_cast %833 : i32 to index
    %835 = memref.load %arg3[%834] : memref<144xf32, #tpu.memory_space<smem>>
    %836 = vector.broadcast %835 : f32 to vector<3x128xf32>
    %837 = arith.addf %816, %836 : vector<3x128xf32>
    %838 = arith.maximumf %813, %837 : vector<3x128xf32>
    %839 = vector.extract_strided_slice %688 {offsets = [0, 36], sizes = [3, 92], strides = [1, 1]} : vector<4x128xf32> to vector<3x92xf32>
    %840 = vector.extract_strided_slice %688 {offsets = [1, 0], sizes = [3, 36], strides = [1, 1]} : vector<4x128xf32> to vector<3x36xf32>
    %841 = tpu.concatenate %839, %840 in 1 : vector<3x92xf32>, vector<3x36xf32> -> vector<3x128xf32>
    %c2_i32_340 = arith.constant 2 : i32
    %842 = arith.muli %arg1, %c2_i32_340 : i32
    %c0_i32_341 = arith.constant 0 : i32
    %843 = arith.addi %842, %c0_i32_341 : i32
    %c4_i32_342 = arith.constant 4 : i32
    %844 = arith.muli %843, %c4_i32_342 : i32
    %845 = arith.addi %844, %690 : i32
    %c9_i32_343 = arith.constant 9 : i32
    %846 = arith.muli %845, %c9_i32_343 : i32
    %c6_i32_344 = arith.constant 6 : i32
    %847 = arith.addi %846, %c6_i32_344 : i32
    %848 = arith.index_cast %847 : i32 to index
    %849 = memref.load %arg3[%848] : memref<144xf32, #tpu.memory_space<smem>>
    %850 = vector.broadcast %849 : f32 to vector<3x128xf32>
    %851 = arith.addf %841, %850 : vector<3x128xf32>
    %852 = arith.maximumf %827, %851 : vector<3x128xf32>
    %c2_i32_345 = arith.constant 2 : i32
    %853 = arith.muli %arg1, %c2_i32_345 : i32
    %c1_i32_346 = arith.constant 1 : i32
    %854 = arith.addi %853, %c1_i32_346 : i32
    %c4_i32_347 = arith.constant 4 : i32
    %855 = arith.muli %854, %c4_i32_347 : i32
    %856 = arith.addi %855, %690 : i32
    %c9_i32_348 = arith.constant 9 : i32
    %857 = arith.muli %856, %c9_i32_348 : i32
    %c6_i32_349 = arith.constant 6 : i32
    %858 = arith.addi %857, %c6_i32_349 : i32
    %859 = arith.index_cast %858 : i32 to index
    %860 = memref.load %arg3[%859] : memref<144xf32, #tpu.memory_space<smem>>
    %861 = vector.broadcast %860 : f32 to vector<3x128xf32>
    %862 = arith.addf %841, %861 : vector<3x128xf32>
    %863 = arith.maximumf %838, %862 : vector<3x128xf32>
    %864 = vector.extract_strided_slice %688 {offsets = [0, 37], sizes = [3, 91], strides = [1, 1]} : vector<4x128xf32> to vector<3x91xf32>
    %865 = vector.extract_strided_slice %688 {offsets = [1, 0], sizes = [3, 37], strides = [1, 1]} : vector<4x128xf32> to vector<3x37xf32>
    %866 = tpu.concatenate %864, %865 in 1 : vector<3x91xf32>, vector<3x37xf32> -> vector<3x128xf32>
    %c2_i32_350 = arith.constant 2 : i32
    %867 = arith.muli %arg1, %c2_i32_350 : i32
    %c0_i32_351 = arith.constant 0 : i32
    %868 = arith.addi %867, %c0_i32_351 : i32
    %c4_i32_352 = arith.constant 4 : i32
    %869 = arith.muli %868, %c4_i32_352 : i32
    %870 = arith.addi %869, %690 : i32
    %c9_i32_353 = arith.constant 9 : i32
    %871 = arith.muli %870, %c9_i32_353 : i32
    %c7_i32_354 = arith.constant 7 : i32
    %872 = arith.addi %871, %c7_i32_354 : i32
    %873 = arith.index_cast %872 : i32 to index
    %874 = memref.load %arg3[%873] : memref<144xf32, #tpu.memory_space<smem>>
    %875 = vector.broadcast %874 : f32 to vector<3x128xf32>
    %876 = arith.addf %866, %875 : vector<3x128xf32>
    %877 = arith.maximumf %852, %876 : vector<3x128xf32>
    %c2_i32_355 = arith.constant 2 : i32
    %878 = arith.muli %arg1, %c2_i32_355 : i32
    %c1_i32_356 = arith.constant 1 : i32
    %879 = arith.addi %878, %c1_i32_356 : i32
    %c4_i32_357 = arith.constant 4 : i32
    %880 = arith.muli %879, %c4_i32_357 : i32
    %881 = arith.addi %880, %690 : i32
    %c9_i32_358 = arith.constant 9 : i32
    %882 = arith.muli %881, %c9_i32_358 : i32
    %c7_i32_359 = arith.constant 7 : i32
    %883 = arith.addi %882, %c7_i32_359 : i32
    %884 = arith.index_cast %883 : i32 to index
    %885 = memref.load %arg3[%884] : memref<144xf32, #tpu.memory_space<smem>>
    %886 = vector.broadcast %885 : f32 to vector<3x128xf32>
    %887 = arith.addf %866, %886 : vector<3x128xf32>
    %888 = arith.maximumf %863, %887 : vector<3x128xf32>
    %889 = vector.extract_strided_slice %688 {offsets = [0, 38], sizes = [3, 90], strides = [1, 1]} : vector<4x128xf32> to vector<3x90xf32>
    %890 = vector.extract_strided_slice %688 {offsets = [1, 0], sizes = [3, 38], strides = [1, 1]} : vector<4x128xf32> to vector<3x38xf32>
    %891 = tpu.concatenate %889, %890 in 1 : vector<3x90xf32>, vector<3x38xf32> -> vector<3x128xf32>
    %c2_i32_360 = arith.constant 2 : i32
    %892 = arith.muli %arg1, %c2_i32_360 : i32
    %c0_i32_361 = arith.constant 0 : i32
    %893 = arith.addi %892, %c0_i32_361 : i32
    %c4_i32_362 = arith.constant 4 : i32
    %894 = arith.muli %893, %c4_i32_362 : i32
    %895 = arith.addi %894, %690 : i32
    %c9_i32_363 = arith.constant 9 : i32
    %896 = arith.muli %895, %c9_i32_363 : i32
    %c8_i32_364 = arith.constant 8 : i32
    %897 = arith.addi %896, %c8_i32_364 : i32
    %898 = arith.index_cast %897 : i32 to index
    %899 = memref.load %arg3[%898] : memref<144xf32, #tpu.memory_space<smem>>
    %900 = vector.broadcast %899 : f32 to vector<3x128xf32>
    %901 = arith.addf %891, %900 : vector<3x128xf32>
    %902 = arith.maximumf %877, %901 : vector<3x128xf32>
    %c2_i32_365 = arith.constant 2 : i32
    %903 = arith.muli %arg1, %c2_i32_365 : i32
    %c1_i32_366 = arith.constant 1 : i32
    %904 = arith.addi %903, %c1_i32_366 : i32
    %c4_i32_367 = arith.constant 4 : i32
    %905 = arith.muli %904, %c4_i32_367 : i32
    %906 = arith.addi %905, %690 : i32
    %c9_i32_368 = arith.constant 9 : i32
    %907 = arith.muli %906, %c9_i32_368 : i32
    %c8_i32_369 = arith.constant 8 : i32
    %908 = arith.addi %907, %c8_i32_369 : i32
    %909 = arith.index_cast %908 : i32 to index
    %910 = memref.load %arg3[%909] : memref<144xf32, #tpu.memory_space<smem>>
    %911 = vector.broadcast %910 : f32 to vector<3x128xf32>
    %912 = arith.addf %891, %911 : vector<3x128xf32>
    %913 = arith.maximumf %888, %912 : vector<3x128xf32>
    %c4_i32_370 = arith.constant 4 : i32
    %c0_371 = arith.constant 0 : index
    %c0_372 = arith.constant 0 : index
    %c0_373 = arith.constant 0 : index
    %c0_374 = arith.constant 0 : index
    %914 = vector.load %arg5[%c0_371, %c0_372, %c0_373, %c0_374] : memref<1x2x3x128xf32, #tpu.memory_space<vmem>>, vector<1x1x3x128xf32>
    %915 = vector.shape_cast %914 : vector<1x1x3x128xf32> to vector<3x128xf32>
    %916 = vector.shape_cast %902 : vector<3x128xf32> to vector<1x1x3x128xf32>
    tpu.vector_store %arg5[%c0_371, %c0_372, %c0_373, %c0_374], %916 {strides = array<i32>} : memref<1x2x3x128xf32, #tpu.memory_space<vmem>>, vector<1x1x3x128xf32>,
    %c0_375 = arith.constant 0 : index
    %c1 = arith.constant 1 : index
    %c0_376 = arith.constant 0 : index
    %c0_377 = arith.constant 0 : index
    %917 = vector.load %arg5[%c0_375, %c1, %c0_376, %c0_377] : memref<1x2x3x128xf32, #tpu.memory_space<vmem>>, vector<1x1x3x128xf32>
    %918 = vector.shape_cast %917 : vector<1x1x3x128xf32> to vector<3x128xf32>
    %919 = vector.shape_cast %913 : vector<3x128xf32> to vector<1x1x3x128xf32>
    tpu.vector_store %arg5[%c0_375, %c1, %c0_376, %c0_377], %919 {strides = array<i32>} : memref<1x2x3x128xf32, #tpu.memory_space<vmem>>, vector<1x1x3x128xf32>,
    return
  }
  func.func @transform_0(%arg0: i32, %arg1: i32, %arg2: i32) -> i32 {
    %c0_i32 = arith.constant 0 : i32
    %c0_i32_0 = arith.constant 0 : i32
    return %c0_i32 : i32
  }
  func.func @transform_1(%arg0: i32, %arg1: i32, %arg2: i32) -> (i32, i32, i32, i32) {
    %c0_i32 = arith.constant 0 : i32
    %c0_i32_0 = arith.constant 0 : i32
    %c0_i32_1 = arith.constant 0 : i32
    return %arg0, %arg2, %c0_i32, %c0_i32_0 : i32, i32, i32, i32
  }
  func.func @transform_2(%arg0: i32, %arg1: i32, %arg2: i32) -> (i32, i32, i32, i32) {
    %c0_i32 = arith.constant 0 : i32
    %c0_i32_0 = arith.constant 0 : i32
    %c0_i32_1 = arith.constant 0 : i32
    return %arg0, %arg1, %c0_i32, %c0_i32_0 : i32, i32, i32, i32
  }
}

</mosaic_0001>

<llo_original>
// kernel: tpu_custom_call.1
$region0: #{tpu_custom_call.1}
  #allocation0 [shape = 'u32[]', space=smem, size = 0x4, offset = 0x4, fixed_abs, tag = 'smem constant byte address 0x4 - core index']
  #allocation1 [shape = 'u32[144,128]{1,0:T(1,128)}', space=vmem, size = 0x12000, scoped, tag = 'internal scratch']
  #allocation2 [shape = 'f32[2,3,128]{2,1,0:T(4,128)}', space=vmem, size = 0x1000, scoped, tag = 'scratch operand']
  %s0 = inlined_call_operand.hbm [shape: f32[144], index: 0, kind: input, shape index: {}]
  %s1 = inlined_call_operand.hbm [shape: f32[2,4,4,128], index: 1, kind: input, shape index: {}]
  %s2 = inlined_call_operand.vmem [shape: f32[2,4,3,128], index: 2, kind: output, shape index: {}]
  %s3 = sld [smem:[#allocation0]]
  $region49: #{tpu_custom_call.1} parent=0
    _
  %s5 = ssub.s32 1, %s3
  %s6 = scalar_select 0, %s5, %s3
  $region1: #{tpu_custom_call.1} parent=0
    #allocation3 [shape = 'u8[1024]{0}', space=smem, size = 0x400, scoped, tag = 'input window, operand 0, single buffered']
    #allocation4 [shape = 's32[2]{0}', space=sflag, size = 0x8, scoped, tag = 'scoped memory for tpu_custom_call.1']
    #allocation5 [shape = 's32[2]{0}', space=sflag, size = 0x8, scoped, tag = 'scoped memory for tpu_custom_call.1']
    #allocation6 [shape = 'u8[16384]{0}', space=vmem, size = 0x4000, scoped, tag = 'input window, operand 1']
    %7 = vsyncpa [#allocation5], 0
    %8 = vsyncpa [#allocation4], 0
    %s9 = scalar_lea.sflag [#allocation4], 1
    %10 = vsyncpa %s9, 0
    loop: start=0, step=1, limit=6
    $region2: #{tpu_custom_call.1} parent=1 // loop_pre_header
      _
    $region3: #{tpu_custom_call.1} parent=1 // loop_header
      %s12 = sphi 0, %s16
      %p13 = scmp.ge.s32.totalorder %s12, 6
      %s19 = sphi 0, %s38
      %s20 = sphi 0, %s34
      %s21 = sphi 0, %s30
      %s22 = sphi 0, %s19
      %s23 = sphi 0, %s20
      %s24 = sphi 0, %s21
      %s25 = sphi 0, %s22
      %s26 = sphi 0, %s23
      %s27 = sphi 0, %s24
      %s39 = sphi 0, %s39
      %s41 = sphi 0, %s39
      %s42 = sphi 0, %s41
      %s56 = sphi 0, %s42
      %s64 = sphi 0, %s66
      %s67 = sphi 0, %s64
      %s68 = sphi 0, %s67
      %s84 = sphi 0, %s68
      %s92 = sphi 0, %s94
      %s95 = sphi 0, %s92
      %s96 = sphi 0, %s95
      %s112 = sphi 0, %s96
    $region4: #{tpu_custom_call.1} parent=1 // loop_header_branch
      %15 = sbr.rel (%p13) target = $region8
    $region5: #{tpu_custom_call.1} parent=1 // loop_body
      %s17 = ssub.s32 %s12, 1
      %s18 = ssub.s32 %s12, 2
      %s28 = sadd.s32 1, %s21
      %p29 = scmp.ge.s32.totalorder %s28, 1
      %s30 = scalar_select %p29, 0, %s28
      %s31 = sadd.s32 1, %s20
      %s32 = scalar_select %p29, %s31, %s20
      %p33 = scmp.ge.s32.totalorder %s32, 2
      %s34 = scalar_select %p33, 0, %s32
      %s35 = sadd.s32 1, %s19
      %s36 = scalar_select %p33, %s35, %s19
      %p37 = scmp.ge.s32.totalorder %s36, 2
      %s38 = scalar_select %p37, 0, %s36
      %s40 = sadd.s32 %s39, 1
      %p43 = scmp.eq.s32.totalorder %s12, 3
      %p44 = scmp.ne.s32.totalorder %s39, %s41
      %p45 = scmp.eq.s32.totalorder %s12, 0
      %p46 = por %p44, %p45
      %p47 = scmp.ne.s32.totalorder %s39, %s41
      %p48 = scmp.eq.s32.totalorder %s17, 3
      %p49 = por %p47, %p48
      %p50 = scmp.ne.s32.totalorder %s41, %s42
      %p51 = scmp.eq.s32.totalorder %s17, 0
      %p52 = por %p50, %p51
      %p53 = scmp.ne.s32.totalorder %s41, %s42
      %p54 = scmp.eq.s32.totalorder %s18, 3
      %p55 = por %p53, %p54
      %p57 = scmp.ne.s32.totalorder %s42, %s56
      %p58 = scmp.eq.s32.totalorder %s18, 0
      %p59 = por %p57, %p58
      %s60 = ssub.s32 %s19, %s38
      %s61 = ssub.s32 %s21, %s30
      %s62 = sor.u32 %s60, %s61
      %p63 = scmp.eq.s32.totalorder %s62, 0
      %s65 = sadd.s32 %s64, 1
      %s66 = scalar_select %p63, %s64, %s65
      %p69 = pneg %p63
      %p70 = scmp.eq.s32.totalorder %s12, 3
      %p71 = por %p69, %p70
      %p72 = scmp.ne.s32.totalorder %s64, %s67
      %p73 = scmp.eq.s32.totalorder %s12, 0
      %p74 = por %p72, %p73
      %p75 = scmp.ne.s32.totalorder %s64, %s67
      %p76 = scmp.eq.s32.totalorder %s17, 3
      %p77 = por %p75, %p76
      %p78 = scmp.ne.s32.totalorder %s67, %s68
      %p79 = scmp.eq.s32.totalorder %s17, 0
      %p80 = por %p78, %p79
      %p81 = scmp.ne.s32.totalorder %s67, %s68
      %p82 = scmp.eq.s32.totalorder %s18, 3
      %p83 = por %p81, %p82
      %p85 = scmp.ne.s32.totalorder %s68, %s84
      %p86 = scmp.eq.s32.totalorder %s18, 0
      %p87 = por %p85, %p86
      %s88 = ssub.s32 %s19, %s38
      %s89 = ssub.s32 %s20, %s34
      %s90 = sor.u32 %s88, %s89
      %p91 = scmp.eq.s32.totalorder %s90, 0
      %s93 = sadd.s32 %s92, 1
      %s94 = scalar_select %p91, %s92, %s93
      %p97 = pneg %p91
      %p98 = scmp.eq.s32.totalorder %s12, 3
      %p99 = por %p97, %p98
      %p100 = scmp.ne.s32.totalorder %s92, %s95
      %p101 = scmp.eq.s32.totalorder %s12, 0
      %p102 = por %p100, %p101
      %p103 = scmp.ne.s32.totalorder %s92, %s95
      %p104 = scmp.eq.s32.totalorder %s17, 3
      %p105 = por %p103, %p104
      %p106 = scmp.ne.s32.totalorder %s95, %s96
      %p107 = scmp.eq.s32.totalorder %s17, 0
      %p108 = por %p106, %p107
      %p109 = scmp.ne.s32.totalorder %s95, %s96
      %p110 = scmp.eq.s32.totalorder %s18, 3
      %p111 = por %p109, %p110
      %p113 = scmp.ne.s32.totalorder %s96, %s112
      %p114 = scmp.eq.s32.totalorder %s18, 0
      %p115 = por %p113, %p114
      %p116 = scmp.le.s32.totalorder 1, %s12
      %p117 = scmp.lt.s32.totalorder %s12, 5
      %p118 = pnand %p116, %p117
      %p119 = pneg %p118
      // Predicated region
      $region9: #{tpu_custom_call.1} parent=5 // pred_check
        _
      $region10: #{tpu_custom_call.1} parent=5 // pred_check_branch
        %121 = sbr.rel (%p118) target = $region12
      $region11: #{tpu_custom_call.1} parent=5 // pred_region
        %s122 = ssub.s32 %s12, 1
        // Predicated region
        $region13: #{tpu_custom_call.1} parent=11 // pred_check
          %p123 = pneg %p52
        $region14: #{tpu_custom_call.1} parent=11 // pred_check_branch
          %125 = sbr.rel (%p123) target = $region16
        $region15: #{tpu_custom_call.1} parent=11 // pred_region
          %s127 = ssub.s32 32, 32
          %128 = vsyncadd [#allocation5], %s127
          %131 = dma.hbm_to_smem %s0, 32, [#allocation3], [#allocation5]
        $region16: #{tpu_custom_call.1} parent=11 // pred_fallthru
          _
      $region12: #{tpu_custom_call.1} parent=5 // pred_fallthru
        _
      %p132 = scmp.lt.s32.totalorder %s12, 4
      // Predicated region
      $region17: #{tpu_custom_call.1} parent=5 // pred_check
        %p133 = pneg %p132
      $region18: #{tpu_custom_call.1} parent=5 // pred_check_branch
        %135 = sbr.rel (%p133) target = $region20
      $region19: #{tpu_custom_call.1} parent=5 // pred_region
        // Predicated region
        $region21: #{tpu_custom_call.1} parent=19 // pred_check
          %p136 = pneg %p74
        $region22: #{tpu_custom_call.1} parent=19 // pred_check_branch
          %138 = sbr.rel (%p136) target = $region24
        $region23: #{tpu_custom_call.1} parent=19 // pred_region
          %s139 = sand.u32 %s64, 1
          %s140 = scalar_lea.sflag [#allocation4], %s139
          %s141 = sand.u32 %s64, 1
          %s142 = smul.addr %s141, 16
          %s143 = scalar_lea.vmem [#allocation6], %s142
          %s144 = smul.u32 4, %s21
          %s146 = ssub.s32 256, 256
          %147 = vsyncadd %s140, %s146
          %s148 = smul.addr %s19, 4
          %s149 = sadd.s32 %s144, %s148
          %s150 = smul.addr %s149, 64
          %s151 = scalar_lea.hbm %s1, %s150
          %s152 = sshll.u32 %s143, 4
          %s153 = int_to_ptr.vmem [resolvable:$true] %s152
          %158 = dma.hbm_to_vmem [thread:$0]  %s151, 256, %s153, %s140, 64, 64, 4
        $region24: #{tpu_custom_call.1} parent=19 // pred_fallthru
          _
      $region20: #{tpu_custom_call.1} parent=5 // pred_fallthru
        _
      %p159 = scmp.le.s32.totalorder 1, %s12
      %p160 = scmp.lt.s32.totalorder %s12, 5
      %p161 = pnand %p159, %p160
      %p162 = pneg %p161
      // Predicated region
      $region25: #{tpu_custom_call.1} parent=5 // pred_check
        _
      $region26: #{tpu_custom_call.1} parent=5 // pred_check_branch
        %164 = sbr.rel (%p161) target = $region28
      $region27: #{tpu_custom_call.1} parent=5 // pred_region
        %s165 = ssub.s32 %s12, 1
        // Predicated region
        $region29: #{tpu_custom_call.1} parent=27 // pred_check
          %p166 = pneg %p52
        $region30: #{tpu_custom_call.1} parent=27 // pred_check_branch
          %168 = sbr.rel (%p166) target = $region32
        $region31: #{tpu_custom_call.1} parent=27 // pred_region
          %169 = dma.done [#allocation5], 32
        $region32: #{tpu_custom_call.1} parent=27 // pred_fallthru
          _
        %s170 = sand.u32 %s67, 1
        %s171 = scalar_lea.sflag [#allocation4], %s170
        %s172 = sand.u32 %s67, 1
        %s173 = smul.addr %s172, 16
        %s174 = scalar_lea.vmem [#allocation6], %s173
        // Predicated region
        $region33: #{tpu_custom_call.1} parent=27 // pred_check
          %p175 = pneg %p80
        $region34: #{tpu_custom_call.1} parent=27 // pred_check_branch
          %177 = sbr.rel (%p175) target = $region36
        $region35: #{tpu_custom_call.1} parent=27 // pred_region
          %178 = dma.done %s171, 256
        $region36: #{tpu_custom_call.1} parent=27 // pred_fallthru
          _
        %179 = sfence
        %p180 = pneg %p52
        %p181 = pneg %p49
        %s182 = sand.u32 %s67, 1
        %s183 = scalar_lea.sflag [#allocation4], %s182
        %s184 = sand.u32 %s67, 1
        %s185 = smul.addr %s184, 16
        %s186 = scalar_lea.vmem [#allocation6], %s185
        %p187 = pneg %p80
        %p188 = pneg %p77
        %p189 = pneg %p108
        %p190 = pneg %p105
        %s191 = smul.u32 2, %s23
        %p192 = scmp.lt.s32.totalorder %s22, 1
        %s193 = scalar_select %p192, %s22, 1
        %p194 = scmp.lt.s32.totalorder %s191, 3
        %s195 = scalar_select %p194, %s191, 3
        %s196 = smul.addr %s193, 4
        %s197 = sadd.s32 %s195, %s196
        %s198 = smul.addr %s197, 4
        %s199 = scalar_lea.vmem %s2, %s198
        %s200 = smul.u32 4, %s24
        %s201 = smul.u32 2, %s23
        %p202 = scmp.lt.s32.totalorder %s22, 1
        %s203 = scalar_select %p202, %s22, 1
        %p204 = scmp.lt.s32.totalorder %s201, 3
        %s205 = scalar_select %p204, %s201, 3
        %s206 = smul.addr %s203, 4
        %s207 = sadd.s32 %s205, %s206
        %s208 = smul.addr %s207, 4
        %s209 = scalar_lea.vmem %s2, %s208
        %s210 = smul.u32 2, %s23
        %v211 = vld [vmem:[%s174] sm:$0xf]
        %s212 = smul.u32 %s24, 4
        %s213 = smul.u32 %s23, 8
        %s214 = sadd.s32 %s213, %s212
        %s215 = smul.u32 %s214, 9
        %s216 = sld [smem:[#allocation3 + %s215]]
        %v217 = vstv %s216
        %v218 = vadd.f32 %v211, %v217
        %s219 = smul.u32 %s23, 2
        %s220 = sadd.s32 %s219, 1
        %s221 = smul.u32 %s220, 4
        %s222 = sadd.s32 %s221, %s212
        %s223 = smul.u32 %s222, 9
        %s224 = sld [smem:[#allocation3 + %s223]]
        %v225 = vstv %s224
        %v226 = vadd.f32 %v211, %v225
        %228 = vrot.lane.b32.xlu0 %v211, 127
        %v229 = vpop.permute.xlu0 %228
        %v231 = vrot.slane %v211, 1
        %232 = vrot.lane.b32.xlu0 %v231, 127
        %v233 = vpop.permute.xlu0 %232
        %vm235 = vcmask 1039360
        %v236 = vsel %vm235, %v229, %v233
        %s237 = sadd.s32 %s215, 1
        %s238 = sld [smem:[#allocation3 + %s237]]
        %v239 = vstv %s238
        %v240 = vadd.f32 %v236, %v239
        %v241 = vmax.f32 %v218, %v240
        %s242 = sadd.s32 %s223, 1
        %s243 = sld [smem:[#allocation3 + %s242]]
        %v244 = vstv %s243
        %v245 = vadd.f32 %v236, %v244
        %v246 = vmax.f32 %v226, %v245
        %247 = vrot.lane.b32.xlu0 %v211, 126
        %v248 = vpop.permute.xlu0 %247
        %250 = vrot.lane.b32.xlu0 %v231, 126
        %v251 = vpop.permute.xlu0 %250
        %vm253 = vcmask 1031168
        %v254 = vsel %vm253, %v248, %v251
        %s255 = sadd.s32 %s215, 2
        %s256 = sld [smem:[#allocation3 + %s255]]
        %v257 = vstv %s256
        %v258 = vadd.f32 %v254, %v257
        %v259 = vmax.f32 %v241, %v258
        %s260 = sadd.s32 %s223, 2
        %s261 = sld [smem:[#allocation3 + %s260]]
        %v262 = vstv %s261
        %v263 = vadd.f32 %v254, %v262
        %v264 = vmax.f32 %v246, %v263
        %265 = vrot.lane.b32.xlu0 %v211, 110
        %v266 = vpop.permute.xlu0 %265
        %268 = vrot.lane.b32.xlu0 %v231, 110
        %v269 = vpop.permute.xlu0 %268
        %vm271 = vcmask 900096
        %v272 = vsel %vm271, %v266, %v269
        %s273 = sadd.s32 %s215, 3
        %s274 = sld [smem:[#allocation3 + %s273]]
        %v275 = vstv %s274
        %v276 = vadd.f32 %v272, %v275
        %v277 = vmax.f32 %v259, %v276
        %s278 = sadd.s32 %s223, 3
        %s279 = sld [smem:[#allocation3 + %s278]]
        %v280 = vstv %s279
        %v281 = vadd.f32 %v272, %v280
        %v282 = vmax.f32 %v264, %v281
        %283 = vrot.lane.b32.xlu0 %v211, 109
        %v284 = vpop.permute.xlu0 %283
        %286 = vrot.lane.b32.xlu0 %v231, 109
        %v287 = vpop.permute.xlu0 %286
        %vm289 = vcmask 891904
        %v290 = vsel %vm289, %v284, %v287
        %s291 = sadd.s32 %s215, 4
        %s292 = sld [smem:[#allocation3 + %s291]]
        %v293 = vstv %s292
        %v294 = vadd.f32 %v290, %v293
        %v295 = vmax.f32 %v277, %v294
        %s296 = sadd.s32 %s223, 4
        %s297 = sld [smem:[#allocation3 + %s296]]
        %v298 = vstv %s297
        %v299 = vadd.f32 %v290, %v298
        %v300 = vmax.f32 %v282, %v299
        %301 = vrot.lane.b32.xlu0 %v211, 108
        %v302 = vpop.permute.xlu0 %301
        %304 = vrot.lane.b32.xlu0 %v231, 108
        %v305 = vpop.permute.xlu0 %304
        %vm307 = vcmask 883712
        %v308 = vsel %vm307, %v302, %v305
        %s309 = sadd.s32 %s215, 5
        %s310 = sld [smem:[#allocation3 + %s309]]
        %v311 = vstv %s310
        %v312 = vadd.f32 %v308, %v311
        %v313 = vmax.f32 %v295, %v312
        %s314 = sadd.s32 %s223, 5
        %s315 = sld [smem:[#allocation3 + %s314]]
        %v316 = vstv %s315
        %v317 = vadd.f32 %v308, %v316
        %v318 = vmax.f32 %v300, %v317
        %319 = vrot.lane.b32.xlu0 %v211, 92
        %v320 = vpop.permute.xlu0 %319
        %322 = vrot.lane.b32.xlu0 %v231, 92
        %v323 = vpop.permute.xlu0 %322
        %vm325 = vcmask 752640
        %v326 = vsel %vm325, %v320, %v323
        %s327 = sadd.s32 %s215, 6
        %s328 = sld [smem:[#allocation3 + %s327]]
        %v329 = vstv %s328
        %v330 = vadd.f32 %v326, %v329
        %v331 = vmax.f32 %v313, %v330
        %s332 = sadd.s32 %s223, 6
        %s333 = sld [smem:[#allocation3 + %s332]]
        %v334 = vstv %s333
        %v335 = vadd.f32 %v326, %v334
        %v336 = vmax.f32 %v318, %v335
        %337 = vrot.lane.b32.xlu0 %v211, 91
        %v338 = vpop.permute.xlu0 %337
        %340 = vrot.lane.b32.xlu0 %v231, 91
        %v341 = vpop.permute.xlu0 %340
        %vm343 = vcmask 744448
        %v344 = vsel %vm343, %v338, %v341
        %s345 = sadd.s32 %s215, 7
        %s346 = sld [smem:[#allocation3 + %s345]]
        %v347 = vstv %s346
        %v348 = vadd.f32 %v344, %v347
        %v349 = vmax.f32 %v331, %v348
        %s350 = sadd.s32 %s223, 7
        %s351 = sld [smem:[#allocation3 + %s350]]
        %v352 = vstv %s351
        %v353 = vadd.f32 %v344, %v352
        %v354 = vmax.f32 %v336, %v353
        %355 = vrot.lane.b32.xlu0 %v211, 90
        %v356 = vpop.permute.xlu0 %355
        %358 = vrot.lane.b32.xlu0 %v231, 90
        %v359 = vpop.permute.xlu0 %358
        %vm361 = vcmask 736256
        %v362 = vsel %vm361, %v356, %v359
        %s363 = sadd.s32 %s215, 8
        %s364 = sld [smem:[#allocation3 + %s363]]
        %v365 = vstv %s364
        %v366 = vadd.f32 %v362, %v365
        %v367 = vmax.f32 %v349, %v366
        %s368 = sadd.s32 %s223, 8
        %s369 = sld [smem:[#allocation3 + %s368]]
        %v370 = vstv %s369
        %v371 = vadd.f32 %v362, %v370
        %v372 = vmax.f32 %v354, %v371
        %s373 = scalar_lea.vmem %s174, 4 [#allocation6]
        %v374 = vld [vmem:[%s373] sm:$0xf]
        %s375 = sadd.s32 %s212, 1
        %s376 = sadd.s32 %s213, %s375
        %s377 = smul.u32 %s376, 9
        %s378 = sld [smem:[#allocation3 + %s377]]
        %v379 = vstv %s378
        %v380 = vadd.f32 %v374, %v379
        %v381 = vmax.f32 %v367, %v380
        %s382 = sadd.s32 %s221, %s375
        %s383 = smul.u32 %s382, 9
        %s384 = sld [smem:[#allocation3 + %s383]]
        %v385 = vstv %s384
        %v386 = vadd.f32 %v374, %v385
        %v387 = vmax.f32 %v372, %v386
        %389 = vrot.lane.b32.xlu0 %v374, 127
        %v390 = vpop.permute.xlu0 %389
        %v392 = vrot.slane %v374, 1
        %393 = vrot.lane.b32.xlu0 %v392, 127
        %v394 = vpop.permute.xlu0 %393
        %v396 = vsel %vm235, %v390, %v394
        %s397 = sadd.s32 %s377, 1
        %s398 = sld [smem:[#allocation3 + %s397]]
        %v399 = vstv %s398
        %v400 = vadd.f32 %v396, %v399
        %v401 = vmax.f32 %v381, %v400
        %s402 = sadd.s32 %s383, 1
        %s403 = sld [smem:[#allocation3 + %s402]]
        %v404 = vstv %s403
        %v405 = vadd.f32 %v396, %v404
        %v406 = vmax.f32 %v387, %v405
        %407 = vrot.lane.b32.xlu0 %v374, 126
        %v408 = vpop.permute.xlu0 %407
        %410 = vrot.lane.b32.xlu0 %v392, 126
        %v411 = vpop.permute.xlu0 %410
        %v413 = vsel %vm253, %v408, %v411
        %s414 = sadd.s32 %s377, 2
        %s415 = sld [smem:[#allocation3 + %s414]]
        %v416 = vstv %s415
        %v417 = vadd.f32 %v413, %v416
        %v418 = vmax.f32 %v401, %v417
        %s419 = sadd.s32 %s383, 2
        %s420 = sld [smem:[#allocation3 + %s419]]
        %v421 = vstv %s420
        %v422 = vadd.f32 %v413, %v421
        %v423 = vmax.f32 %v406, %v422
        %424 = vrot.lane.b32.xlu0 %v374, 110
        %v425 = vpop.permute.xlu0 %424
        %427 = vrot.lane.b32.xlu0 %v392, 110
        %v428 = vpop.permute.xlu0 %427
        %v430 = vsel %vm271, %v425, %v428
        %s431 = sadd.s32 %s377, 3
        %s432 = sld [smem:[#allocation3 + %s431]]
        %v433 = vstv %s432
        %v434 = vadd.f32 %v430, %v433
        %v435 = vmax.f32 %v418, %v434
        %s436 = sadd.s32 %s383, 3
        %s437 = sld [smem:[#allocation3 + %s436]]
        %v438 = vstv %s437
        %v439 = vadd.f32 %v430, %v438
        %v440 = vmax.f32 %v423, %v439
        %441 = vrot.lane.b32.xlu0 %v374, 109
        %v442 = vpop.permute.xlu0 %441
        %444 = vrot.lane.b32.xlu0 %v392, 109
        %v445 = vpop.permute.xlu0 %444
        %v447 = vsel %vm289, %v442, %v445
        %s448 = sadd.s32 %s377, 4
        %s449 = sld [smem:[#allocation3 + %s448]]
        %v450 = vstv %s449
        %v451 = vadd.f32 %v447, %v450
        %v452 = vmax.f32 %v435, %v451
        %s453 = sadd.s32 %s383, 4
        %s454 = sld [smem:[#allocation3 + %s453]]
        %v455 = vstv %s454
        %v456 = vadd.f32 %v447, %v455
        %v457 = vmax.f32 %v440, %v456
        %458 = vrot.lane.b32.xlu0 %v374, 108
        %v459 = vpop.permute.xlu0 %458
        %461 = vrot.lane.b32.xlu0 %v392, 108
        %v462 = vpop.permute.xlu0 %461
        %v464 = vsel %vm307, %v459, %v462
        %s465 = sadd.s32 %s377, 5
        %s466 = sld [smem:[#allocation3 + %s465]]
        %v467 = vstv %s466
        %v468 = vadd.f32 %v464, %v467
        %v469 = vmax.f32 %v452, %v468
        %s470 = sadd.s32 %s383, 5
        %s471 = sld [smem:[#allocation3 + %s470]]
        %v472 = vstv %s471
        %v473 = vadd.f32 %v464, %v472
        %v474 = vmax.f32 %v457, %v473
        %475 = vrot.lane.b32.xlu0 %v374, 92
        %v476 = vpop.permute.xlu0 %475
        %478 = vrot.lane.b32.xlu0 %v392, 92
        %v479 = vpop.permute.xlu0 %478
        %v481 = vsel %vm325, %v476, %v479
        %s482 = sadd.s32 %s377, 6
        %s483 = sld [smem:[#allocation3 + %s482]]
        %v484 = vstv %s483
        %v485 = vadd.f32 %v481, %v484
        %v486 = vmax.f32 %v469, %v485
        %s487 = sadd.s32 %s383, 6
        %s488 = sld [smem:[#allocation3 + %s487]]
        %v489 = vstv %s488
        %v490 = vadd.f32 %v481, %v489
        %v491 = vmax.f32 %v474, %v490
        %492 = vrot.lane.b32.xlu0 %v374, 91
        %v493 = vpop.permute.xlu0 %492
        %495 = vrot.lane.b32.xlu0 %v392, 91
        %v496 = vpop.permute.xlu0 %495
        %v498 = vsel %vm343, %v493, %v496
        %s499 = sadd.s32 %s377, 7
        %s500 = sld [smem:[#allocation3 + %s499]]
        %v501 = vstv %s500
        %v502 = vadd.f32 %v498, %v501
        %v503 = vmax.f32 %v486, %v502
        %s504 = sadd.s32 %s383, 7
        %s505 = sld [smem:[#allocation3 + %s504]]
        %v506 = vstv %s505
        %v507 = vadd.f32 %v498, %v506
        %v508 = vmax.f32 %v491, %v507
        %509 = vrot.lane.b32.xlu0 %v374, 90
        %v510 = vpop.permute.xlu0 %509
        %512 = vrot.lane.b32.xlu0 %v392, 90
        %v513 = vpop.permute.xlu0 %512
        %v515 = vsel %vm361, %v510, %v513
        %s516 = sadd.s32 %s377, 8
        %s517 = sld [smem:[#allocation3 + %s516]]
        %v518 = vstv %s517
        %v519 = vadd.f32 %v515, %v518
        %v520 = vmax.f32 %v503, %v519
        %s521 = sadd.s32 %s383, 8
        %s522 = sld [smem:[#allocation3 + %s521]]
        %v523 = vstv %s522
        %v524 = vadd.f32 %v515, %v523
        %v525 = vmax.f32 %v508, %v524
        %s526 = scalar_lea.vmem %s174, 8 [#allocation6]
        %v527 = vld [vmem:[%s526] sm:$0xf]
        %s528 = sadd.s32 %s212, 2
        %s529 = sadd.s32 %s213, %s528
        %s530 = smul.u32 %s529, 9
        %s531 = sld [smem:[#allocation3 + %s530]]
        %v532 = vstv %s531
        %v533 = vadd.f32 %v527, %v532
        %v534 = vmax.f32 %v520, %v533
        %s535 = sadd.s32 %s221, %s528
        %s536 = smul.u32 %s535, 9
        %s537 = sld [smem:[#allocation3 + %s536]]
        %v538 = vstv %s537
        %v539 = vadd.f32 %v527, %v538
        %v540 = vmax.f32 %v525, %v539
        %542 = vrot.lane.b32.xlu0 %v527, 127
        %v543 = vpop.permute.xlu0 %542
        %v545 = vrot.slane %v527, 1
        %546 = vrot.lane.b32.xlu0 %v545, 127
        %v547 = vpop.permute.xlu0 %546
        %v549 = vsel %vm235, %v543, %v547
        %s550 = sadd.s32 %s530, 1
        %s551 = sld [smem:[#allocation3 + %s550]]
        %v552 = vstv %s551
        %v553 = vadd.f32 %v549, %v552
        %v554 = vmax.f32 %v534, %v553
        %s555 = sadd.s32 %s536, 1
        %s556 = sld [smem:[#allocation3 + %s555]]
        %v557 = vstv %s556
        %v558 = vadd.f32 %v549, %v557
        %v559 = vmax.f32 %v540, %v558
        %560 = vrot.lane.b32.xlu0 %v527, 126
        %v561 = vpop.permute.xlu0 %560
        %563 = vrot.lane.b32.xlu0 %v545, 126
        %v564 = vpop.permute.xlu0 %563
        %v566 = vsel %vm253, %v561, %v564
        %s567 = sadd.s32 %s530, 2
        %s568 = sld [smem:[#allocation3 + %s567]]
        %v569 = vstv %s568
        %v570 = vadd.f32 %v566, %v569
        %v571 = vmax.f32 %v554, %v570
        %s572 = sadd.s32 %s536, 2
        %s573 = sld [smem:[#allocation3 + %s572]]
        %v574 = vstv %s573
        %v575 = vadd.f32 %v566, %v574
        %v576 = vmax.f32 %v559, %v575
        %577 = vrot.lane.b32.xlu0 %v527, 110
        %v578 = vpop.permute.xlu0 %577
        %580 = vrot.lane.b32.xlu0 %v545, 110
        %v581 = vpop.permute.xlu0 %580
        %v583 = vsel %vm271, %v578, %v581
        %s584 = sadd.s32 %s530, 3
        %s585 = sld [smem:[#allocation3 + %s584]]
        %v586 = vstv %s585
        %v587 = vadd.f32 %v583, %v586
        %v588 = vmax.f32 %v571, %v587
        %s589 = sadd.s32 %s536, 3
        %s590 = sld [smem:[#allocation3 + %s589]]
        %v591 = vstv %s590
        %v592 = vadd.f32 %v583, %v591
        %v593 = vmax.f32 %v576, %v592
        %594 = vrot.lane.b32.xlu0 %v527, 109
        %v595 = vpop.permute.xlu0 %594
        %597 = vrot.lane.b32.xlu0 %v545, 109
        %v598 = vpop.permute.xlu0 %597
        %v600 = vsel %vm289, %v595, %v598
        %s601 = sadd.s32 %s530, 4
        %s602 = sld [smem:[#allocation3 + %s601]]
        %v603 = vstv %s602
        %v604 = vadd.f32 %v600, %v603
        %v605 = vmax.f32 %v588, %v604
        %s606 = sadd.s32 %s536, 4
        %s607 = sld [smem:[#allocation3 + %s606]]
        %v608 = vstv %s607
        %v609 = vadd.f32 %v600, %v608
        %v610 = vmax.f32 %v593, %v609
        %611 = vrot.lane.b32.xlu0 %v527, 108
        %v612 = vpop.permute.xlu0 %611
        %614 = vrot.lane.b32.xlu0 %v545, 108
        %v615 = vpop.permute.xlu0 %614
        %v617 = vsel %vm307, %v612, %v615
        %s618 = sadd.s32 %s530, 5
        %s619 = sld [smem:[#allocation3 + %s618]]
        %v620 = vstv %s619
        %v621 = vadd.f32 %v617, %v620
        %v622 = vmax.f32 %v605, %v621
        %s623 = sadd.s32 %s536, 5
        %s624 = sld [smem:[#allocation3 + %s623]]
        %v625 = vstv %s624
        %v626 = vadd.f32 %v617, %v625
        %v627 = vmax.f32 %v610, %v626
        %628 = vrot.lane.b32.xlu0 %v527, 92
        %v629 = vpop.permute.xlu0 %628
        %631 = vrot.lane.b32.xlu0 %v545, 92
        %v632 = vpop.permute.xlu0 %631
        %v634 = vsel %vm325, %v629, %v632
        %s635 = sadd.s32 %s530, 6
        %s636 = sld [smem:[#allocation3 + %s635]]
        %v637 = vstv %s636
        %v638 = vadd.f32 %v634, %v637
        %v639 = vmax.f32 %v622, %v638
        %s640 = sadd.s32 %s536, 6
        %s641 = sld [smem:[#allocation3 + %s640]]
        %v642 = vstv %s641
        %v643 = vadd.f32 %v634, %v642
        %v644 = vmax.f32 %v627, %v643
        %645 = vrot.lane.b32.xlu0 %v527, 91
        %v646 = vpop.permute.xlu0 %645
        %648 = vrot.lane.b32.xlu0 %v545, 91
        %v649 = vpop.permute.xlu0 %648
        %v651 = vsel %vm343, %v646, %v649
        %s652 = sadd.s32 %s530, 7
        %s653 = sld [smem:[#allocation3 + %s652]]
        %v654 = vstv %s653
        %v655 = vadd.f32 %v651, %v654
        %v656 = vmax.f32 %v639, %v655
        %s657 = sadd.s32 %s536, 7
        %s658 = sld [smem:[#allocation3 + %s657]]
        %v659 = vstv %s658
        %v660 = vadd.f32 %v651, %v659
        %v661 = vmax.f32 %v644, %v660
        %662 = vrot.lane.b32.xlu0 %v527, 90
        %v663 = vpop.permute.xlu0 %662
        %665 = vrot.lane.b32.xlu0 %v545, 90
        %v666 = vpop.permute.xlu0 %665
        %v668 = vsel %vm361, %v663, %v666
        %s669 = sadd.s32 %s530, 8
        %s670 = sld [smem:[#allocation3 + %s669]]
        %v671 = vstv %s670
        %v672 = vadd.f32 %v668, %v671
        %v673 = vmax.f32 %v656, %v672
        %s674 = sadd.s32 %s536, 8
        %s675 = sld [smem:[#allocation3 + %s674]]
        %v676 = vstv %s675
        %v677 = vadd.f32 %v668, %v676
        %v678 = vmax.f32 %v661, %v677
        %s679 = scalar_lea.vmem %s174, 12 [#allocation6]
        %v680 = vld [vmem:[%s679] sm:$0xf]
        %s681 = sadd.s32 %s212, 3
        %s682 = sadd.s32 %s213, %s681
        %s683 = smul.u32 %s682, 9
        %s684 = sld [smem:[#allocation3 + %s683]]
        %v685 = vstv %s684
        %v686 = vadd.f32 %v680, %v685
        %v687 = vmax.f32 %v673, %v686
        %s688 = sadd.s32 %s221, %s681
        %s689 = smul.u32 %s688, 9
        %s690 = sld [smem:[#allocation3 + %s689]]
        %v691 = vstv %s690
        %v692 = vadd.f32 %v680, %v691
        %v693 = vmax.f32 %v678, %v692
        %695 = vrot.lane.b32.xlu0 %v680, 127
        %v696 = vpop.permute.xlu0 %695
        %v698 = vrot.slane %v680, 1
        %699 = vrot.lane.b32.xlu0 %v698, 127
        %v700 = vpop.permute.xlu0 %699
        %v702 = vsel %vm235, %v696, %v700
        %s703 = sadd.s32 %s683, 1
        %s704 = sld [smem:[#allocation3 + %s703]]
        %v705 = vstv %s704
        %v706 = vadd.f32 %v702, %v705
        %v707 = vmax.f32 %v687, %v706
        %s708 = sadd.s32 %s689, 1
        %s709 = sld [smem:[#allocation3 + %s708]]
        %v710 = vstv %s709
        %v711 = vadd.f32 %v702, %v710
        %v712 = vmax.f32 %v693, %v711
        %713 = vrot.lane.b32.xlu0 %v680, 126
        %v714 = vpop.permute.xlu0 %713
        %716 = vrot.lane.b32.xlu0 %v698, 126
        %v717 = vpop.permute.xlu0 %716
        %v719 = vsel %vm253, %v714, %v717
        %s720 = sadd.s32 %s683, 2
        %s721 = sld [smem:[#allocation3 + %s720]]
        %v722 = vstv %s721
        %v723 = vadd.f32 %v719, %v722
        %v724 = vmax.f32 %v707, %v723
        %s725 = sadd.s32 %s689, 2
        %s726 = sld [smem:[#allocation3 + %s725]]
        %v727 = vstv %s726
        %v728 = vadd.f32 %v719, %v727
        %v729 = vmax.f32 %v712, %v728
        %730 = vrot.lane.b32.xlu0 %v680, 110
        %v731 = vpop.permute.xlu0 %730
        %733 = vrot.lane.b32.xlu0 %v698, 110
        %v734 = vpop.permute.xlu0 %733
        %v736 = vsel %vm271, %v731, %v734
        %s737 = sadd.s32 %s683, 3
        %s738 = sld [smem:[#allocation3 + %s737]]
        %v739 = vstv %s738
        %v740 = vadd.f32 %v736, %v739
        %v741 = vmax.f32 %v724, %v740
        %s742 = sadd.s32 %s689, 3
        %s743 = sld [smem:[#allocation3 + %s742]]
        %v744 = vstv %s743
        %v745 = vadd.f32 %v736, %v744
        %v746 = vmax.f32 %v729, %v745
        %747 = vrot.lane.b32.xlu0 %v680, 109
        %v748 = vpop.permute.xlu0 %747
        %750 = vrot.lane.b32.xlu0 %v698, 109
        %v751 = vpop.permute.xlu0 %750
        %v753 = vsel %vm289, %v748, %v751
        %s754 = sadd.s32 %s683, 4
        %s755 = sld [smem:[#allocation3 + %s754]]
        %v756 = vstv %s755
        %v757 = vadd.f32 %v753, %v756
        %v758 = vmax.f32 %v741, %v757
        %s759 = sadd.s32 %s689, 4
        %s760 = sld [smem:[#allocation3 + %s759]]
        %v761 = vstv %s760
        %v762 = vadd.f32 %v753, %v761
        %v763 = vmax.f32 %v746, %v762
        %764 = vrot.lane.b32.xlu0 %v680, 108
        %v765 = vpop.permute.xlu0 %764
        %767 = vrot.lane.b32.xlu0 %v698, 108
        %v768 = vpop.permute.xlu0 %767
        %v770 = vsel %vm307, %v765, %v768
        %s771 = sadd.s32 %s683, 5
        %s772 = sld [smem:[#allocation3 + %s771]]
        %v773 = vstv %s772
        %v774 = vadd.f32 %v770, %v773
        %v775 = vmax.f32 %v758, %v774
        %s776 = sadd.s32 %s689, 5
        %s777 = sld [smem:[#allocation3 + %s776]]
        %v778 = vstv %s777
        %v779 = vadd.f32 %v770, %v778
        %v780 = vmax.f32 %v763, %v779
        %781 = vrot.lane.b32.xlu0 %v680, 92
        %v782 = vpop.permute.xlu0 %781
        %784 = vrot.lane.b32.xlu0 %v698, 92
        %v785 = vpop.permute.xlu0 %784
        %v787 = vsel %vm325, %v782, %v785
        %s788 = sadd.s32 %s683, 6
        %s789 = sld [smem:[#allocation3 + %s788]]
        %v790 = vstv %s789
        %v791 = vadd.f32 %v787, %v790
        %v792 = vmax.f32 %v775, %v791
        %s793 = sadd.s32 %s689, 6
        %s794 = sld [smem:[#allocation3 + %s793]]
        %v795 = vstv %s794
        %v796 = vadd.f32 %v787, %v795
        %v797 = vmax.f32 %v780, %v796
        %798 = vrot.lane.b32.xlu0 %v680, 91
        %v799 = vpop.permute.xlu0 %798
        %801 = vrot.lane.b32.xlu0 %v698, 91
        %v802 = vpop.permute.xlu0 %801
        %v804 = vsel %vm343, %v799, %v802
        %s805 = sadd.s32 %s683, 7
        %s806 = sld [smem:[#allocation3 + %s805]]
        %v807 = vstv %s806
        %v808 = vadd.f32 %v804, %v807
        %v809 = vmax.f32 %v792, %v808
        %s810 = sadd.s32 %s689, 7
        %s811 = sld [smem:[#allocation3 + %s810]]
        %v812 = vstv %s811
        %v813 = vadd.f32 %v804, %v812
        %v814 = vmax.f32 %v797, %v813
        %815 = vrot.lane.b32.xlu0 %v680, 90
        %v816 = vpop.permute.xlu0 %815
        %818 = vrot.lane.b32.xlu0 %v698, 90
        %v819 = vpop.permute.xlu0 %818
        %v821 = vsel %vm361, %v816, %v819
        %s822 = sadd.s32 %s683, 8
        %s823 = sld [smem:[#allocation3 + %s822]]
        %v824 = vstv %s823
        %v825 = vadd.f32 %v821, %v824
        %v826 = vmax.f32 %v809, %v825
        %s827 = sadd.s32 %s689, 8
        %s828 = sld [smem:[#allocation3 + %s827]]
        %v829 = vstv %s828
        %v830 = vadd.f32 %v821, %v829
        %v831 = vmax.f32 %v814, %v830
        %832 = vst [vmem:[%s209] sm:$0x7] %v826
        %s833 = scalar_lea.vmem %s209, 4
        %834 = vst [vmem:[%s833] sm:$0x7] %v831
        %s835 = smul.u32 2, %s23
        %p836 = scmp.lt.s32.totalorder %s22, 1
        %s837 = scalar_select %p836, %s22, 1
        %p838 = scmp.lt.s32.totalorder %s835, 3
        %s839 = scalar_select %p838, %s835, 3
        %s840 = smul.addr %s837, 4
        %s841 = sadd.s32 %s839, %s840
        %s842 = smul.addr %s841, 4
        %s843 = scalar_lea.vmem %s2, %s842
        // Predicated region
        $region37: #{tpu_custom_call.1} parent=27 // pred_check
          %p844 = pneg %p105
        $region38: #{tpu_custom_call.1} parent=27 // pred_check_branch
          %846 = sbr.rel (%p844) target = $region40
        $region39: #{tpu_custom_call.1} parent=27 // pred_region
          %s847 = smul.u32 2, %s23
        $region40: #{tpu_custom_call.1} parent=27 // pred_fallthru
          _
      $region28: #{tpu_custom_call.1} parent=5 // pred_fallthru
        _
      %p848 = scmp.le.s32.totalorder 2, %s12
      // Predicated region
      $region41: #{tpu_custom_call.1} parent=5 // pred_check
        %p849 = pneg %p848
      $region42: #{tpu_custom_call.1} parent=5 // pred_check_branch
        %851 = sbr.rel (%p849) target = $region44
      $region43: #{tpu_custom_call.1} parent=5 // pred_region
        %s852 = ssub.s32 %s12, 2
        // Predicated region
        $region45: #{tpu_custom_call.1} parent=43 // pred_check
          %p853 = pneg %p111
        $region46: #{tpu_custom_call.1} parent=43 // pred_check_branch
          %855 = sbr.rel (%p853) target = $region48
        $region47: #{tpu_custom_call.1} parent=43 // pred_region
          %s856 = smul.u32 2, %s26
          %p857 = scmp.lt.s32.totalorder %s25, 1
          %s858 = scalar_select %p857, %s25, 1
          %p859 = scmp.lt.s32.totalorder %s856, 3
          %s860 = scalar_select %p859, %s856, 3
          %s861 = smul.addr %s858, 4
          %s862 = sadd.s32 %s860, %s861
          %s863 = smul.addr %s862, 4
          %s864 = scalar_lea.vmem %s2, %s863
        $region48: #{tpu_custom_call.1} parent=43 // pred_fallthru
          _
      $region44: #{tpu_custom_call.1} parent=5 // pred_fallthru
        _
    $region6: #{tpu_custom_call.1} parent=1 // loop_footer
      %s16 = sadd.s32 1, %s12
    $region7: #{tpu_custom_call.1} parent=1 // loop_footer_branch
      %11 = sbr.rel target = $region3
    $region8: #{tpu_custom_call.1} parent=1 // loop_exit
      _
    %865 = vsyncpa [#allocation4], 1
    %s866 = scalar_lea.sflag [#allocation4], 1
    %867 = vsyncpa %s866, 1
    %868 = vsyncpa [#allocation5], 1
    %s869 = scalar_lea.sflag [#allocation5], 1
    %870 = vsyncpa %s869, 1

</llo_original>
